<compile_context>
chip_gen: v6e
topology: v6e:2x2x1
jax: 0.10.0
libtpu: 0.0.40
codegen_flags: <defaults>
</compile_context>

<pallas_src>
import numpy as np
import jax
import jax.numpy as jnp
from jax import lax
from jax.experimental import pallas as pl
from jax.experimental.pallas import tpu as pltpu

N_SIGMA = 2
FOREGROUND_WEIGHT = 200.0
FOCUSING_PARAM = 2.0   # focus_ratio
BALANCE_PARAM = 1.0
CLS_RATIO = 1.0

# torch.linspace(0, 2, 2048) step and torch.linspace(0, 1, 1024) step
X_STEP = 2.0 / 2047.0
Y_STEP = 1.0 / 1023.0


# ----------------------------------------------------------------------------
# Planning helpers (review items: Buffered(1), in-kernel K loop, size-aware vmem limit)
# ----------------------------------------------------------------------------
def _vmem_cap_bytes():
    try:
        kind = jax.devices()[0].device_kind.lower()
    except Exception:
        kind = ""
    if "v7" in kind:
        return 56 * 2**20          # v7x: 64 MiB physical per TensorCore
    return 100 * 2**20             # v5e / v6e: 128 MiB physical


def _plan(C, H, W, K):
    """Pick the per-grid-step instance-group size and a size-aware VMEM limit."""
    K = max(int(K), 1)
    map_b = H * W * 4
    scratch = 3 * map_b + 4096                 # ex / ey / seed scratch + scalar accumulators
    in_single = (C + 2) * map_b                # pred + instances + labels, one copy
    temps = 8 * map_b                          # transient per-instance maps (mask, dist, concats)
    cap = _vmem_cap_bytes()
    budget = min(40 * 2**20, cap // 2)

    def footprint(kps, nkg):
        in_buf = 2 if nkg == 1 else 1          # Buffered(1) once inputs are revisited over groups
        dist_blk = 2 * kps * H * W * 2         # double-buffered bf16 output block
        stats_blk = 2 * 8 * 128 * 4
        return scratch + in_buf * in_single + temps + dist_blk + stats_blk

    kps = K
    while kps > 1 and footprint(kps, -(-K // kps)) > budget:
        kps -= 1
    nkg = -(-K // kps)
    vmem_limit = int(min(cap, max(32 * 2**20, footprint(kps, nkg) + (8 << 20))))
    return kps, nkg, vmem_limit


# ----------------------------------------------------------------------------
# Kernel
# ----------------------------------------------------------------------------
def _make_kernel(H, W, k_per_step):
    hw = float(H * W)
    unroll = k_per_step <= 8

    def kernel(ids_ref, pred_ref, inst_ref, label_ref,          # scalar-prefetch + inputs
               stats_ref, dist_ref,                             # outputs
               ex_s, ey_s, seed_s,                              # per-batch maps (scratch)
               var_s, fg_s, obj_s, bg_s, ce_s, vc_s):           # (1,1) accumulators
        b = pl.program_id(0)
        kg = pl.program_id(1)

        ones_w = jnp.ones((W, 1), jnp.float32)

        def msum(g):
            # (H, W) -> (1, 1): lane reduction on the MXU, tiny sublane sum after.
            col = jnp.dot(g, ones_w, preferred_element_type=jnp.float32)
            return jnp.sum(col, axis=0, keepdims=True)

        # ------------------------------------------------------------------
        # Per-batch work: transforms + batch-level sums, once per b (kg == 0).
        # ------------------------------------------------------------------
        @pl.when(kg == 0)
        def _init():
            xm = lax.broadcasted_iota(jnp.int32, (H, W), 1).astype(jnp.float32) * X_STEP
            ym = lax.broadcasted_iota(jnp.int32, (H, W), 0).astype(jnp.float32) * Y_STEP
            # spatial_emb = tanh(pred[0:2]) + xym
            ex_s[...] = jnp.tanh(pred_ref[0, 0]) + xm
            ey_s[...] = jnp.tanh(pred_ref[0, 1]) + ym
            # sigmoid seed map; the divide goes through the (otherwise idle) EUP reciprocal.
            seed = pl.reciprocal(1.0 + jnp.exp(-pred_ref[0, 4]), approx=True)
            seed_s[...] = seed

            label = label_ref[0]
            # background seed loss: sum_{label==0} seed^2
            bg = (label == 0).astype(jnp.float32)
            bg_s[...] = msum(bg * seed * seed)

            # classification cross-entropy over valid (label < 2) pixels
            valid = (label < 2).astype(jnp.float32)
            cls0 = pred_ref[0, 5]
            cls1 = pred_ref[0, 6]
            mx = jnp.maximum(cls0, cls1)
            lse = mx + jnp.log(jnp.exp(cls0 - mx) + jnp.exp(cls1 - mx))
            logit_t = jnp.where(label == 1, cls1, cls0)
            ce_s[...] = msum(valid * (lse - logit_t))
            vc_s[...] = msum(valid)

            var_s[...] = jnp.zeros((1, 1), jnp.float32)
            fg_s[...] = jnp.zeros((1, 1), jnp.float32)
            obj_s[...] = jnp.zeros((1, 1), jnp.float32)

        # ------------------------------------------------------------------
        # Loop-invariant values, hoisted out of the per-instance loop.
        # ------------------------------------------------------------------
        inst = inst_ref[0]
        sig0 = pred_ref[0, 2]
        sig1 = pred_ref[0, 3]
        ex = ex_s[...]
        ey = ey_s[...]
        seed_map = seed_s[...]
        y_col = lax.broadcasted_iota(jnp.int32, (H, 1), 0).astype(jnp.float32) * Y_STEP
        cidx = lax.broadcasted_iota(jnp.int32, (W, 2), 1)
        widx = lax.broadcasted_iota(jnp.int32, (W, 2), 0).astype(jnp.float32)
        rhs2 = jnp.where(cidx == 0, 1.0, widx * X_STEP)     # (W, 2) = [ones | x]

        # ------------------------------------------------------------------
        # Per-instance work: k_per_step slots handled inside one grid step.
        # ------------------------------------------------------------------
        def slot_body(j, carry):
            k = kg * k_per_step + j
            idv = ids_ref[b, k]

            @pl.when(idv != 0)
            def _instance():
                mask = (inst == idv).astype(jnp.float32)
                m0 = mask * sig0
                m1 = mask * sig1

                # Fused MXU reduction #1: one matmul gives the mask marginals,
                # the x first moment and both sigma first moments.
                red = jnp.dot(jnp.concatenate([mask, m0, m1], axis=0), rhs2,
                              preferred_element_type=jnp.float32)          # (3H, 2)
                cs = red[0:H, 0:1]                                          # per-row mask counts
                cnt = jnp.sum(cs, axis=0, keepdims=True)
                sum_x = jnp.sum(red[0:H, 1:2], axis=0, keepdims=True)
                sum_y = jnp.sum(cs * y_col, axis=0, keepdims=True)
                ss0 = jnp.sum(red[H:2 * H, 0:1], axis=0, keepdims=True)
                ss1 = jnp.sum(red[2 * H:3 * H, 0:1], axis=0, keepdims=True)

                safe_cnt = jnp.maximum(cnt, 1.0)
                inv_cnt = pl.reciprocal(safe_cnt, approx=True)
                cx = sum_x * inv_cnt          # to_center=True: mean of xym over the mask
                cy = sum_y * inv_cnt
                s0 = ss0 * inv_cnt            # per-instance sigma means
                s1 = ss1 * inv_cnt

                # Gaussian dist map.  Clamp the exponent to avoid exp(10*s)=inf
                # producing 0*inf NaNs (overflow-regime guard only).
                e0 = jnp.exp(jnp.minimum(s0 * 10.0, 60.0))
                e1 = jnp.exp(jnp.minimum(s1 * 10.0, 60.0))
                dx = ex - cx
                dy = ey - cy
                # TODO(synk): on v6e/v7x cast the exponent to bf16 before exp (bf16 EUP).
                dist = jnp.exp(-(dx * dx * e0 + dy * dy * e1))

                # Fused MXU reduction #2: two-pass variance + foreground seed term.
                d0 = sig0 - s0
                d1 = sig1 - s1
                fd = seed_map - dist
                red2 = jnp.dot(
                    jnp.concatenate([mask * (d0 * d0 + d1 * d1),
                                     mask * (fd * fd)], axis=0),
                    ones_w, preferred_element_type=jnp.float32)             # (2H, 1)
                var_sum = jnp.sum(red2[0:H], axis=0, keepdims=True)
                fg_sum = jnp.sum(red2[H:2 * H], axis=0, keepdims=True)

                var_s[...] = var_s[...] + var_sum * (inv_cnt / float(N_SIGMA))
                fg_s[...] = fg_s[...] + fg_sum
                obj_s[...] = obj_s[...] + 1.0

                # bf16 writeback: halves the dominant HBM stream of the pipeline.
                dist_ref[0, j, :, :] = dist.astype(jnp.bfloat16)

            @pl.when(idv == 0)
            def _padded():
                dist_ref[0, j, :, :] = jnp.zeros((H, W), jnp.bfloat16)

            return carry

        lax.fori_loop(0, k_per_step, slot_body, 0, unroll=unroll)

        # ------------------------------------------------------------------
        # Finalize per-batch scalars at the last instance group.
        # ------------------------------------------------------------------
        @pl.when(kg == pl.num_programs(1) - 1)
        def _final():
            safe_obj = jnp.maximum(obj_s[...], 1.0)
            var_loss = var_s[...] / safe_obj
            seed_loss = (bg_s[...] + FOREGROUND_WEIGHT * fg_s[...]) / hw
            rows = lax.broadcasted_iota(jnp.int32, (8, 128), 0)
            stats = (jnp.where(rows == 0, var_loss, 0.0)
                     + jnp.where(rows == 1, seed_loss, 0.0)
                     + jnp.where(rows == 2, ce_s[...], 0.0)
                     + jnp.where(rows == 3, vc_s[...], 0.0)
                     + jnp.where(rows == 4, obj_s[...], 0.0))
            stats_ref[0] = stats

    return kernel


def _run_pallas(pred, instances, labels, ids, k_per_step, num_kg, vmem_limit):
    B, C, H, W = pred.shape
    K_pad = k_per_step * num_kg
    kernel = _make_kernel(H, W, k_per_step)
    revisit = num_kg > 1

    def in_spec(shape, imap):
        if revisit:
            # Inputs whose block index depends only on b are revisited across the
            # group axis: single-buffer them (review: pl.Buffered(1)) so the big
            # per-batch blocks do not get double-buffered.
            return pl.BlockSpec(shape, imap, pipeline_mode=pl.Buffered(1))
        return pl.BlockSpec(shape, imap)

    grid_spec = pltpu.PrefetchScalarGridSpec(
        num_scalar_prefetch=1,
        grid=(B, num_kg),
        in_specs=[
            in_spec((1, C, H, W), lambda b, kg, ids_r: (b, 0, 0, 0)),
            in_spec((1, H, W), lambda b, kg, ids_r: (b, 0, 0)),
            in_spec((1, H, W), lambda b, kg, ids_r: (b, 0, 0)),
        ],
        out_specs=(
            pl.BlockSpec((1, 8, 128), lambda b, kg, ids_r: (b, 0, 0)),
            pl.BlockSpec((1, k_per_step, H, W), lambda b, kg, ids_r: (b, kg, 0, 0)),
        ),
        scratch_shapes=[
            pltpu.VMEM((H, W), jnp.float32),   # ex  (spatial emb x)
            pltpu.VMEM((H, W), jnp.float32),   # ey  (spatial emb y)
            pltpu.VMEM((H, W), jnp.float32),   # seed map
            pltpu.VMEM((1, 1), jnp.float32),   # var accumulator
            pltpu.VMEM((1, 1), jnp.float32),   # fg seed accumulator
            pltpu.VMEM((1, 1), jnp.float32),   # obj count
            pltpu.VMEM((1, 1), jnp.float32),   # bg seed sum
            pltpu.VMEM((1, 1), jnp.float32),   # CE sum
            pltpu.VMEM((1, 1), jnp.float32),   # valid pixel count
        ],
    )
    stats, dists = pl.pallas_call(
        kernel,
        out_shape=(jax.ShapeDtypeStruct((B, 8, 128), jnp.float32),
                   jax.ShapeDtypeStruct((B, K_pad, H, W), jnp.bfloat16)),
        grid_spec=grid_spec,
        compiler_params=pltpu.CompilerParams(
            dimension_semantics=("parallel", "arbitrary"),
            vmem_limit_bytes=int(vmem_limit)),
    )(ids, pred, instances, labels)
    return stats, dists


# ----------------------------------------------------------------------------
# Host-side pieces
# ----------------------------------------------------------------------------
def _lovasz_hinge_flat(dist_flat, inst_flat, idv):
    # TODO(synk): lovasz_hinge source was not provided with the module; this is the
    # standard sort-based Lovasz hinge kept in plain JAX (per-slot argsort/cumsum
    # has no clean Pallas TPU equivalent).  The instance mask is built here from
    # (instances, id) so no (B,K,H,W) float32 mask tensor is ever materialized.
    labels = (inst_flat == idv).astype(jnp.float32)
    logits = dist_flat.astype(jnp.float32) * 2.0 - 1.0
    signs = 2.0 * labels - 1.0
    errors = 1.0 - logits * signs
    order = jnp.argsort(-errors)
    errors_sorted = errors[order]
    gt_sorted = labels[order]
    gts = jnp.sum(gt_sorted)
    intersection = gts - jnp.cumsum(gt_sorted)
    union = gts + jnp.cumsum(1.0 - gt_sorted)
    jaccard = 1.0 - intersection / union
    jaccard = jnp.concatenate([jaccard[:1], jaccard[1:] - jaccard[:-1]])
    return jnp.dot(jnp.maximum(errors_sorted, 0.0), jaccard)


def mots_seg_cls_loss(prediction, instances, labels, ids,
                      w_inst=1.0, w_var=10.0, w_seed=1.0, seed_w=None):
    B, C, H, W = prediction.shape
    K = ids.shape[1]
    k_per_step, num_kg, vmem_limit = _plan(C, H, W, K)
    K_pad = k_per_step * num_kg

    ids = jnp.asarray(ids, jnp.int32)
    if K_pad > K:
        ids = jnp.pad(ids, ((0, 0), (0, K_pad - K)))       # pad with id 0 (empty slots)
    if seed_w is None:
        seed_w = jnp.ones((B,), prediction.dtype)

    stats, dists = _run_pallas(prediction, instances, labels, ids,
                               k_per_step, num_kg, vmem_limit)

    var_loss = stats[:, 0, 0]        # (B,)  already divided by obj count
    seed_loss = stats[:, 1, 0]       # (B,)
    ce_sum = stats[:, 2, 0]          # (B,)
    valid_cnt = stats[:, 3, 0]       # (B,)
    obj_count = stats[:, 4, 0]       # (B,)

    # Focal classification loss (FocalLoss(balance_param=1, focusing=2), aggregate-CE form).
    # TODO(synk): FocalOHEMLoss (criterions/ghm_loss.py) source is not available; the OHEM
    # hard-example-mining variant is not reproduced.
    ce_mean = ce_sum / jnp.maximum(valid_cnt, 1.0)
    pt = jnp.exp(-ce_mean)
    focal = BALANCE_PARAM * (1.0 - pt) ** FOCUSING_PARAM * ce_mean
    cls_loss = jnp.sum(CLS_RATIO * focal * seed_w)

    # Lovasz hinge over all (B, K_pad) instance slots; padded slots (id == 0, zero bf16
    # dist from the kernel) are weighted out exactly.
    dist_flat = dists.reshape(B, K_pad, H * W)
    inst_flat = instances.reshape(B, H * W)
    lov = jax.vmap(
        lambda d_b, i_b, id_b: jax.vmap(
            lambda d_k, id_k: _lovasz_hinge_flat(d_k, i_b, id_k))(d_b, id_b)
    )(dist_flat, inst_flat, ids)                                         # (B, K_pad)
    slot_w = (ids != 0).astype(jnp.float32)
    instance_loss = jnp.sum(lov * slot_w, axis=1) / jnp.maximum(obj_count, 1.0)

    per_b = (w_inst * instance_loss + w_var * var_loss + w_seed * seed_loss) * seed_w
    loss = jnp.sum(per_b) / B + cls_loss / B
    return loss   # "+ prediction.sum() * 0" is a no-op
    # TODO(synk): forward-only; a custom_vjp (with stop_gradient on dist / sigma means as in
    # the reference .detach() calls) would be needed for jax.grad support.


if __name__ == "__main__":
    key = jax.random.PRNGKey(0)
    B, H, W = 2, 16, 128
    C = 2 + N_SIGMA + 1 + 2   # = 7 prediction channels
    prediction = 0.5 * jax.random.normal(key, (B, C, H, W), jnp.float32)

    yy, xx = jnp.meshgrid(jnp.arange(H), jnp.arange(W), indexing="ij")
    inst0 = jnp.zeros((H, W), jnp.int32)
    inst0 = jnp.where((xx < 48) & (yy >= 4) & (yy < 14), 1, inst0)
    inst0 = jnp.where((xx >= 64) & (xx < 112) & (yy >= 2) & (yy < 10), 2, inst0)
    inst1 = jnp.zeros((H, W), jnp.int32)
    inst1 = jnp.where((xx >= 16) & (xx < 96) & (yy >= 6), 3, inst1)
    instances = jnp.stack([inst0, inst1], axis=0).astype(jnp.int32)

    labels = jnp.where(instances > 0, 1, 0).astype(jnp.int32)
    labels = labels.at[:, 0:2, 0:8].set(2)   # a few "ignore" (label == 2) pixels

    # per-batch instance-id table (padded with 0 for empty slots)
    ids_list = []
    for b in range(B):
        u = np.unique(np.asarray(instances[b]))
        ids_list.append(u[u != 0])
    K = max(1, max(len(u) for u in ids_list))
    ids = np.zeros((B, K), np.int32)
    for b, u in enumerate(ids_list):
        ids[b, :len(u)] = u

    loss = jax.jit(mots_seg_cls_loss)(prediction, instances, labels, ids)
    jax.block_until_ready(loss)
    print("KERNEL_OK")
</pallas_src>

<mosaic_0001>
module attributes {stable_mosaic.version = 11 : i64} {
  func.func @kernel(%arg0: i32, %arg1: i32, %arg2: memref<2x2xi32, #tpu.memory_space<smem>>, %arg3: memref<1x7x16x128xf32, #tpu.memory_space<vmem>>, %arg4: memref<1x16x128xi32, #tpu.memory_space<vmem>>, %arg5: memref<1x16x128xi32, #tpu.memory_space<vmem>>, %arg6: memref<1x8x128xf32, #tpu.memory_space<vmem>>, %arg7: memref<1x2x16x128xbf16, #tpu.memory_space<vmem>>, %arg8: memref<16x128xf32, #tpu.memory_space<vmem>>, %arg9: memref<16x128xf32, #tpu.memory_space<vmem>>, %arg10: memref<16x128xf32, #tpu.memory_space<vmem>>, %arg11: memref<1x1xf32, #tpu.memory_space<vmem>>, %arg12: memref<1x1xf32, #tpu.memory_space<vmem>>, %arg13: memref<1x1xf32, #tpu.memory_space<vmem>>, %arg14: memref<1x1xf32, #tpu.memory_space<vmem>>, %arg15: memref<1x1xf32, #tpu.memory_space<vmem>>, %arg16: memref<1x1xf32, #tpu.memory_space<vmem>>) attributes {dimension_semantics = [#tpu.dimension_semantics<parallel>, #tpu.dimension_semantics<arbitrary>], iteration_bounds = array<i64: 2, 1>, scalar_prefetch = 1 : i64, scratch_operands = 9 : i64, tpu.core_type = #tpu.core_type<tc>, window_params = [{transform_indices = @transform_0, window_bounds = array<i64: 1, 7, 16, 128>}, {transform_indices = @transform_1, window_bounds = array<i64: 1, 16, 128>}, {transform_indices = @transform_2, window_bounds = array<i64: 1, 16, 128>}, {transform_indices = @transform_3, window_bounds = array<i64: 1, 8, 128>}, {transform_indices = @transform_4, window_bounds = array<i64: 1, 2, 16, 128>}]} {
    %cst = arith.constant 1.000000e+00 : f32
    %0 = vector.broadcast %cst : f32 to vector<128x1xf32>
    %c0_i32 = arith.constant 0 : i32
    %1 = arith.cmpi eq, %arg1, %c0_i32 : i32
    %2 = arith.extui %1 : i1 to i32
    %c0_i32_0 = arith.constant 0 : i32
    %3 = arith.cmpi ne, %2, %c0_i32_0 : i32
    scf.if %3 {
      %51 = tpu.iota {dimensions = array<i32: 1>} : vector<16x128xi32>
      %52 = arith.sitofp %51 : vector<16x128xi32> to vector<16x128xf32>
      %cst_32 = arith.constant 9.77039569E-4 : f32
      %53 = vector.broadcast %cst_32 : f32 to vector<16x128xf32>
      %54 = arith.mulf %52, %53 : vector<16x128xf32>
      %55 = tpu.iota {dimensions = array<i32: 0>} : vector<16x128xi32>
      %56 = arith.sitofp %55 : vector<16x128xi32> to vector<16x128xf32>
      %cst_33 = arith.constant 9.77517105E-4 : f32
      %57 = vector.broadcast %cst_33 : f32 to vector<16x128xf32>
      %58 = arith.mulf %56, %57 : vector<16x128xf32>
      %c0_34 = arith.constant 0 : index
      %c0_35 = arith.constant 0 : index
      %c0_36 = arith.constant 0 : index
      %c0_37 = arith.constant 0 : index
      %59 = vector.load %arg3[%c0_34, %c0_35, %c0_36, %c0_37] : memref<1x7x16x128xf32, #tpu.memory_space<vmem>>, vector<1x1x16x128xf32>
      %60 = vector.shape_cast %59 : vector<1x1x16x128xf32> to vector<16x128xf32>
      %61 = math.tanh %60 : vector<16x128xf32>
      %62 = arith.addf %61, %54 : vector<16x128xf32>
      %c0_38 = arith.constant 0 : index
      %c0_39 = arith.constant 0 : index
      %63 = vector.load %arg8[%c0_38, %c0_39] : memref<16x128xf32, #tpu.memory_space<vmem>>, vector<16x128xf32>
      tpu.vector_store %arg8[%c0_38, %c0_39], %62 {strides = array<i32>} : memref<16x128xf32, #tpu.memory_space<vmem>>, vector<16x128xf32>,
      %c0_40 = arith.constant 0 : index
      %c1 = arith.constant 1 : index
      %c0_41 = arith.constant 0 : index
      %c0_42 = arith.constant 0 : index
      %64 = vector.load %arg3[%c0_40, %c1, %c0_41, %c0_42] : memref<1x7x16x128xf32, #tpu.memory_space<vmem>>, vector<1x1x16x128xf32>
      %65 = vector.shape_cast %64 : vector<1x1x16x128xf32> to vector<16x128xf32>
      %66 = math.tanh %65 : vector<16x128xf32>
      %67 = arith.addf %66, %58 : vector<16x128xf32>
      %c0_43 = arith.constant 0 : index
      %c0_44 = arith.constant 0 : index
      %68 = vector.load %arg9[%c0_43, %c0_44] : memref<16x128xf32, #tpu.memory_space<vmem>>, vector<16x128xf32>
      tpu.vector_store %arg9[%c0_43, %c0_44], %67 {strides = array<i32>} : memref<16x128xf32, #tpu.memory_space<vmem>>, vector<16x128xf32>,
      %c0_45 = arith.constant 0 : index
      %c4 = arith.constant 4 : index
      %c0_46 = arith.constant 0 : index
      %c0_47 = arith.constant 0 : index
      %69 = vector.load %arg3[%c0_45, %c4, %c0_46, %c0_47] : memref<1x7x16x128xf32, #tpu.memory_space<vmem>>, vector<1x1x16x128xf32>
      %70 = vector.shape_cast %69 : vector<1x1x16x128xf32> to vector<16x128xf32>
      %cst_48 = arith.constant 0.000000e+00 : f32
      %71 = vector.broadcast %cst_48 : f32 to vector<16x128xf32>
      %72 = arith.subf %71, %70 : vector<16x128xf32>
      %73 = math.exp %72 : vector<16x128xf32>
      %cst_49 = arith.constant 1.000000e+00 : f32
      %74 = vector.broadcast %cst_49 : f32 to vector<16x128xf32>
      %75 = arith.addf %74, %73 : vector<16x128xf32>
      %76 = tpu.reciprocal %75 {approx = true} : vector<16x128xf32> -> vector<16x128xf32>
      %c0_50 = arith.constant 0 : index
      %c0_51 = arith.constant 0 : index
      %77 = vector.load %arg10[%c0_50, %c0_51] : memref<16x128xf32, #tpu.memory_space<vmem>>, vector<16x128xf32>
      tpu.vector_store %arg10[%c0_50, %c0_51], %76 {strides = array<i32>} : memref<16x128xf32, #tpu.memory_space<vmem>>, vector<16x128xf32>,
      %c0_52 = arith.constant 0 : index
      %c0_53 = arith.constant 0 : index
      %c0_54 = arith.constant 0 : index
      %78 = vector.load %arg5[%c0_52, %c0_53, %c0_54] : memref<1x16x128xi32, #tpu.memory_space<vmem>>, vector<1x16x128xi32>
      %79 = vector.shape_cast %78 : vector<1x16x128xi32> to vector<16x128xi32>
      %c0_i32_55 = arith.constant 0 : i32
      %80 = vector.broadcast %c0_i32_55 : i32 to vector<16x128xi32>
      %81 = arith.cmpi eq, %79, %80 : vector<16x128xi32>
      %82 = arith.extui %81 : vector<16x128xi1> to vector<16x128xi32>
      %83 = arith.sitofp %82 : vector<16x128xi32> to vector<16x128xf32>
      %84 = arith.mulf %83, %76 : vector<16x128xf32>
      %85 = arith.mulf %84, %76 : vector<16x128xf32>
      %cst_56 = arith.constant dense<0.000000e+00> : vector<16x1xf32>
      %86 = tpu.matmul %85, %0, %cst_56 {dimension_numbers = #tpu.dot_dimension_numbers<[1], [0], [0], [1], [0, 0, 1, 1], [], []>} : vector<16x128xf32>, vector<128x1xf32>, vector<16x1xf32> -> vector<16x1xf32>
      %cst_57 = arith.constant dense<0.000000e+00> : vector<1xf32>
      %87 = vector.multi_reduction <add>, %86, %cst_57 [0] : vector<16x1xf32> to vector<1xf32>
      %88 = vector.shape_cast %87 : vector<1xf32> to vector<1x1xf32>
      %c0_58 = arith.constant 0 : index
      %c0_59 = arith.constant 0 : index
      %89 = vector.load %arg14[%c0_58, %c0_59] : memref<1x1xf32, #tpu.memory_space<vmem>>, vector<1x1xf32>
      tpu.vector_store %arg14[%c0_58, %c0_59], %88 {strides = array<i32>} : memref<1x1xf32, #tpu.memory_space<vmem>>, vector<1x1xf32>,
      %c2_i32_60 = arith.constant 2 : i32
      %90 = vector.broadcast %c2_i32_60 : i32 to vector<16x128xi32>
      %91 = arith.cmpi slt, %79, %90 : vector<16x128xi32>
      %92 = arith.extui %91 : vector<16x128xi1> to vector<16x128xi32>
      %93 = arith.sitofp %92 : vector<16x128xi32> to vector<16x128xf32>
      %c0_61 = arith.constant 0 : index
      %c5 = arith.constant 5 : index
      %c0_62 = arith.constant 0 : index
      %c0_63 = arith.constant 0 : index
      %94 = vector.load %arg3[%c0_61, %c5, %c0_62, %c0_63] : memref<1x7x16x128xf32, #tpu.memory_space<vmem>>, vector<1x1x16x128xf32>
      %95 = vector.shape_cast %94 : vector<1x1x16x128xf32> to vector<16x128xf32>
      %c0_64 = arith.constant 0 : index
      %c6 = arith.constant 6 : index
      %c0_65 = arith.constant 0 : index
      %c0_66 = arith.constant 0 : index
      %96 = vector.load %arg3[%c0_64, %c6, %c0_65, %c0_66] : memref<1x7x16x128xf32, #tpu.memory_space<vmem>>, vector<1x1x16x128xf32>
      %97 = vector.shape_cast %96 : vector<1x1x16x128xf32> to vector<16x128xf32>
      %98 = arith.maximumf %95, %97 : vector<16x128xf32>
      %99 = arith.subf %95, %98 : vector<16x128xf32>
      %100 = math.exp %99 : vector<16x128xf32>
      %101 = arith.subf %97, %98 : vector<16x128xf32>
      %102 = math.exp %101 : vector<16x128xf32>
      %103 = arith.addf %100, %102 : vector<16x128xf32>
      %104 = math.log %103 : vector<16x128xf32>
      %105 = arith.addf %98, %104 : vector<16x128xf32>
      %c1_i32_67 = arith.constant 1 : i32
      %106 = vector.broadcast %c1_i32_67 : i32 to vector<16x128xi32>
      %107 = arith.cmpi eq, %79, %106 : vector<16x128xi32>
      %108 = arith.select %107, %97, %95 : vector<16x128xi1>, vector<16x128xf32>
      %109 = arith.subf %105, %108 : vector<16x128xf32>
      %110 = arith.mulf %93, %109 : vector<16x128xf32>
      %cst_68 = arith.constant dense<0.000000e+00> : vector<16x1xf32>
      %111 = tpu.matmul %110, %0, %cst_68 {dimension_numbers = #tpu.dot_dimension_numbers<[1], [0], [0], [1], [0, 0, 1, 1], [], []>} : vector<16x128xf32>, vector<128x1xf32>, vector<16x1xf32> -> vector<16x1xf32>
      %cst_69 = arith.constant dense<0.000000e+00> : vector<1xf32>
      %112 = vector.multi_reduction <add>, %111, %cst_69 [0] : vector<16x1xf32> to vector<1xf32>
      %113 = vector.shape_cast %112 : vector<1xf32> to vector<1x1xf32>
      %c0_70 = arith.constant 0 : index
      %c0_71 = arith.constant 0 : index
      %114 = vector.load %arg15[%c0_70, %c0_71] : memref<1x1xf32, #tpu.memory_space<vmem>>, vector<1x1xf32>
      tpu.vector_store %arg15[%c0_70, %c0_71], %113 {strides = array<i32>} : memref<1x1xf32, #tpu.memory_space<vmem>>, vector<1x1xf32>,
      %cst_72 = arith.constant dense<0.000000e+00> : vector<16x1xf32>
      %115 = tpu.matmul %93, %0, %cst_72 {dimension_numbers = #tpu.dot_dimension_numbers<[1], [0], [0], [1], [0, 0, 1, 1], [], []>} : vector<16x128xf32>, vector<128x1xf32>, vector<16x1xf32> -> vector<16x1xf32>
      %cst_73 = arith.constant dense<0.000000e+00> : vector<1xf32>
      %116 = vector.multi_reduction <add>, %115, %cst_73 [0] : vector<16x1xf32> to vector<1xf32>
      %117 = vector.shape_cast %116 : vector<1xf32> to vector<1x1xf32>
      %c0_74 = arith.constant 0 : index
      %c0_75 = arith.constant 0 : index
      %118 = vector.load %arg16[%c0_74, %c0_75] : memref<1x1xf32, #tpu.memory_space<vmem>>, vector<1x1xf32>
      tpu.vector_store %arg16[%c0_74, %c0_75], %117 {strides = array<i32>} : memref<1x1xf32, #tpu.memory_space<vmem>>, vector<1x1xf32>,
      %cst_76 = arith.constant 0.000000e+00 : f32
      %119 = vector.broadcast %cst_76 : f32 to vector<1x1xf32>
      %c0_77 = arith.constant 0 : index
      %c0_78 = arith.constant 0 : index
      %120 = vector.load %arg11[%c0_77, %c0_78] : memref<1x1xf32, #tpu.memory_space<vmem>>, vector<1x1xf32>
      tpu.vector_store %arg11[%c0_77, %c0_78], %119 {strides = array<i32>} : memref<1x1xf32, #tpu.memory_space<vmem>>, vector<1x1xf32>,
      %cst_79 = arith.constant 0.000000e+00 : f32
      %121 = vector.broadcast %cst_79 : f32 to vector<1x1xf32>
      %c0_80 = arith.constant 0 : index
      %c0_81 = arith.constant 0 : index
      %122 = vector.load %arg12[%c0_80, %c0_81] : memref<1x1xf32, #tpu.memory_space<vmem>>, vector<1x1xf32>
      tpu.vector_store %arg12[%c0_80, %c0_81], %121 {strides = array<i32>} : memref<1x1xf32, #tpu.memory_space<vmem>>, vector<1x1xf32>,
      %cst_82 = arith.constant 0.000000e+00 : f32
      %123 = vector.broadcast %cst_82 : f32 to vector<1x1xf32>
      %c0_83 = arith.constant 0 : index
      %c0_84 = arith.constant 0 : index
      %124 = vector.load %arg13[%c0_83, %c0_84] : memref<1x1xf32, #tpu.memory_space<vmem>>, vector<1x1xf32>
      tpu.vector_store %arg13[%c0_83, %c0_84], %123 {strides = array<i32>} : memref<1x1xf32, #tpu.memory_space<vmem>>, vector<1x1xf32>,
    } else {
    }
    %c0 = arith.constant 0 : index
    %c0_1 = arith.constant 0 : index
    %c0_2 = arith.constant 0 : index
    %4 = vector.load %arg4[%c0, %c0_1, %c0_2] : memref<1x16x128xi32, #tpu.memory_space<vmem>>, vector<1x16x128xi32>
    %5 = vector.shape_cast %4 : vector<1x16x128xi32> to vector<16x128xi32>
    %c0_3 = arith.constant 0 : index
    %c2 = arith.constant 2 : index
    %c0_4 = arith.constant 0 : index
    %c0_5 = arith.constant 0 : index
    %6 = vector.load %arg3[%c0_3, %c2, %c0_4, %c0_5] : memref<1x7x16x128xf32, #tpu.memory_space<vmem>>, vector<1x1x16x128xf32>
    %7 = vector.shape_cast %6 : vector<1x1x16x128xf32> to vector<16x128xf32>
    %c0_6 = arith.constant 0 : index
    %c3 = arith.constant 3 : index
    %c0_7 = arith.constant 0 : index
    %c0_8 = arith.constant 0 : index
    %8 = vector.load %arg3[%c0_6, %c3, %c0_7, %c0_8] : memref<1x7x16x128xf32, #tpu.memory_space<vmem>>, vector<1x1x16x128xf32>
    %9 = vector.shape_cast %8 : vector<1x1x16x128xf32> to vector<16x128xf32>
    %c0_9 = arith.constant 0 : index
    %c0_10 = arith.constant 0 : index
    %10 = vector.load %arg8[%c0_9, %c0_10] : memref<16x128xf32, #tpu.memory_space<vmem>>, vector<16x128xf32>
    %c0_11 = arith.constant 0 : index
    %c0_12 = arith.constant 0 : index
    %11 = vector.load %arg9[%c0_11, %c0_12] : memref<16x128xf32, #tpu.memory_space<vmem>>, vector<16x128xf32>
    %c0_13 = arith.constant 0 : index
    %c0_14 = arith.constant 0 : index
    %12 = vector.load %arg10[%c0_13, %c0_14] : memref<16x128xf32, #tpu.memory_space<vmem>>, vector<16x128xf32>
    %13 = tpu.iota {dimensions = array<i32: 0>} : vector<16x1xi32>
    %14 = arith.sitofp %13 : vector<16x1xi32> to vector<16x1xf32>
    %cst_15 = arith.constant 9.77517105E-4 : f32
    %15 = vector.broadcast %cst_15 : f32 to vector<16x1xf32>
    %16 = arith.mulf %14, %15 : vector<16x1xf32>
    %17 = tpu.iota {dimensions = array<i32: 1>} : vector<128x2xi32>
    %18 = tpu.iota {dimensions = array<i32: 0>} : vector<128x2xi32>
    %19 = arith.sitofp %18 : vector<128x2xi32> to vector<128x2xf32>
    %c0_i32_16 = arith.constant 0 : i32
    %20 = vector.broadcast %c0_i32_16 : i32 to vector<128x2xi32>
    %21 = arith.cmpi eq, %17, %20 : vector<128x2xi32>
    %cst_17 = arith.constant 9.77039569E-4 : f32
    %22 = vector.broadcast %cst_17 : f32 to vector<128x2xf32>
    %23 = arith.mulf %19, %22 : vector<128x2xf32>
    %cst_18 = arith.constant 1.000000e+00 : f32
    %24 = vector.broadcast %cst_18 : f32 to vector<128x2xf32>
    %25 = arith.select %21, %24, %23 : vector<128x2xi1>, vector<128x2xf32>
    %c0_i32_19 = arith.constant 0 : i32
    %c2_i32 = arith.constant 2 : i32
    %26 = arith.muli %arg1, %c2_i32 : i32
    %27 = arith.addi %26, %c0_i32_19 : i32
    %28 = arith.index_cast %arg0 : i32 to index
    %29 = arith.index_cast %27 : i32 to index
    %30 = memref.load %arg2[%28, %29] : memref<2x2xi32, #tpu.memory_space<smem>>
    %c0_i32_20 = arith.constant 0 : i32
    %31 = arith.cmpi ne, %30, %c0_i32_20 : i32
    %32 = arith.extui %31 : i1 to i32
    %c0_i32_21 = arith.constant 0 : i32
    %33 = arith.cmpi ne, %32, %c0_i32_21 : i32
    scf.if %33 {
      %51 = vector.broadcast %30 : i32 to vector<16x128xi32>
      %52 = arith.cmpi eq, %5, %51 : vector<16x128xi32>
      %53 = arith.extui %52 : vector<16x128xi1> to vector<16x128xi32>
      %54 = arith.sitofp %53 : vector<16x128xi32> to vector<16x128xf32>
      %55 = arith.mulf %54, %7 : vector<16x128xf32>
      %56 = arith.mulf %54, %9 : vector<16x128xf32>
      %57 = tpu.concatenate %54, %55, %56 in 0 : vector<16x128xf32>, vector<16x128xf32>, vector<16x128xf32> -> vector<48x128xf32>
      %cst_32 = arith.constant dense<0.000000e+00> : vector<48x2xf32>
      %58 = tpu.matmul %57, %25, %cst_32 {dimension_numbers = #tpu.dot_dimension_numbers<[1], [0], [0], [1], [0, 0, 1, 1], [], []>} : vector<48x128xf32>, vector<128x2xf32>, vector<48x2xf32> -> vector<48x2xf32>
      %59 = vector.extract_strided_slice %58 {offsets = [0, 0], sizes = [16, 1], strides = [1, 1]} : vector<48x2xf32> to vector<16x1xf32>
      %cst_33 = arith.constant dense<0.000000e+00> : vector<1xf32>
      %60 = vector.multi_reduction <add>, %59, %cst_33 [0] : vector<16x1xf32> to vector<1xf32>
      %61 = vector.shape_cast %60 : vector<1xf32> to vector<1x1xf32>
      %62 = vector.extract_strided_slice %58 {offsets = [0, 1], sizes = [16, 1], strides = [1, 1]} : vector<48x2xf32> to vector<16x1xf32>
      %cst_34 = arith.constant dense<0.000000e+00> : vector<1xf32>
      %63 = vector.multi_reduction <add>, %62, %cst_34 [0] : vector<16x1xf32> to vector<1xf32>
      %64 = vector.shape_cast %63 : vector<1xf32> to vector<1x1xf32>
      %65 = arith.mulf %59, %16 : vector<16x1xf32>
      %cst_35 = arith.constant dense<0.000000e+00> : vector<1xf32>
      %66 = vector.multi_reduction <add>, %65, %cst_35 [0] : vector<16x1xf32> to vector<1xf32>
      %67 = vector.shape_cast %66 : vector<1xf32> to vector<1x1xf32>
      %68 = vector.extract_strided_slice %58 {offsets = [16, 0], sizes = [16, 1], strides = [1, 1]} : vector<48x2xf32> to vector<16x1xf32>
      %cst_36 = arith.constant dense<0.000000e+00> : vector<1xf32>
      %69 = vector.multi_reduction <add>, %68, %cst_36 [0] : vector<16x1xf32> to vector<1xf32>
      %70 = vector.shape_cast %69 : vector<1xf32> to vector<1x1xf32>
      %71 = vector.extract_strided_slice %58 {offsets = [32, 0], sizes = [16, 1], strides = [1, 1]} : vector<48x2xf32> to vector<16x1xf32>
      %cst_37 = arith.constant dense<0.000000e+00> : vector<1xf32>
      %72 = vector.multi_reduction <add>, %71, %cst_37 [0] : vector<16x1xf32> to vector<1xf32>
      %73 = vector.shape_cast %72 : vector<1xf32> to vector<1x1xf32>
      %cst_38 = arith.constant 1.000000e+00 : f32
      %74 = vector.broadcast %cst_38 : f32 to vector<1x1xf32>
      %75 = arith.maximumf %61, %74 : vector<1x1xf32>
      %76 = tpu.reciprocal %75 {approx = true} : vector<1x1xf32> -> vector<1x1xf32>
      %77 = arith.mulf %64, %76 : vector<1x1xf32>
      %78 = arith.mulf %67, %76 : vector<1x1xf32>
      %79 = arith.mulf %70, %76 : vector<1x1xf32>
      %80 = arith.mulf %73, %76 : vector<1x1xf32>
      %cst_39 = arith.constant 1.000000e+01 : f32
      %81 = vector.broadcast %cst_39 : f32 to vector<1x1xf32>
      %82 = arith.mulf %79, %81 : vector<1x1xf32>
      %cst_40 = arith.constant 6.000000e+01 : f32
      %83 = vector.broadcast %cst_40 : f32 to vector<1x1xf32>
      %84 = arith.minimumf %82, %83 : vector<1x1xf32>
      %85 = math.exp %84 : vector<1x1xf32>
      %cst_41 = arith.constant 1.000000e+01 : f32
      %86 = vector.broadcast %cst_41 : f32 to vector<1x1xf32>
      %87 = arith.mulf %80, %86 : vector<1x1xf32>
      %cst_42 = arith.constant 6.000000e+01 : f32
      %88 = vector.broadcast %cst_42 : f32 to vector<1x1xf32>
      %89 = arith.minimumf %87, %88 : vector<1x1xf32>
      %90 = math.exp %89 : vector<1x1xf32>
      %91 = vector.broadcast %77 : vector<1x1xf32> to vector<16x128xf32>
      %92 = arith.subf %10, %91 : vector<16x128xf32>
      %93 = vector.broadcast %78 : vector<1x1xf32> to vector<16x128xf32>
      %94 = arith.subf %11, %93 : vector<16x128xf32>
      %95 = arith.mulf %92, %92 : vector<16x128xf32>
      %96 = vector.broadcast %85 : vector<1x1xf32> to vector<16x128xf32>
      %97 = arith.mulf %95, %96 : vector<16x128xf32>
      %98 = arith.mulf %94, %94 : vector<16x128xf32>
      %99 = vector.broadcast %90 : vector<1x1xf32> to vector<16x128xf32>
      %100 = arith.mulf %98, %99 : vector<16x128xf32>
      %101 = arith.addf %97, %100 : vector<16x128xf32>
      %cst_43 = arith.constant 0.000000e+00 : f32
      %102 = vector.broadcast %cst_43 : f32 to vector<16x128xf32>
      %103 = arith.subf %102, %101 : vector<16x128xf32>
      %104 = math.exp %103 : vector<16x128xf32>
      %105 = vector.broadcast %79 : vector<1x1xf32> to vector<16x128xf32>
      %106 = arith.subf %7, %105 : vector<16x128xf32>
      %107 = vector.broadcast %80 : vector<1x1xf32> to vector<16x128xf32>
      %108 = arith.subf %9, %107 : vector<16x128xf32>
      %109 = arith.subf %12, %104 : vector<16x128xf32>
      %110 = arith.mulf %106, %106 : vector<16x128xf32>
      %111 = arith.mulf %108, %108 : vector<16x128xf32>
      %112 = arith.addf %110, %111 : vector<16x128xf32>
      %113 = arith.mulf %54, %112 : vector<16x128xf32>
      %114 = arith.mulf %109, %109 : vector<16x128xf32>
      %115 = arith.mulf %54, %114 : vector<16x128xf32>
      %116 = tpu.concatenate %113, %115 in 0 : vector<16x128xf32>, vector<16x128xf32> -> vector<32x128xf32>
      %cst_44 = arith.constant dense<0.000000e+00> : vector<32x1xf32>
      %117 = tpu.matmul %116, %0, %cst_44 {dimension_numbers = #tpu.dot_dimension_numbers<[1], [0], [0], [1], [0, 0, 1, 1], [], []>} : vector<32x128xf32>, vector<128x1xf32>, vector<32x1xf32> -> vector<32x1xf32>
      %118 = vector.extract_strided_slice %117 {offsets = [0, 0], sizes = [16, 1], strides = [1, 1]} : vector<32x1xf32> to vector<16x1xf32>
      %cst_45 = arith.constant dense<0.000000e+00> : vector<1xf32>
      %119 = vector.multi_reduction <add>, %118, %cst_45 [0] : vector<16x1xf32> to vector<1xf32>
      %120 = vector.shape_cast %119 : vector<1xf32> to vector<1x1xf32>
      %121 = vector.extract_strided_slice %117 {offsets = [16, 0], sizes = [16, 1], strides = [1, 1]} : vector<32x1xf32> to vector<16x1xf32>
      %cst_46 = arith.constant dense<0.000000e+00> : vector<1xf32>
      %122 = vector.multi_reduction <add>, %121, %cst_46 [0] : vector<16x1xf32> to vector<1xf32>
      %123 = vector.shape_cast %122 : vector<1xf32> to vector<1x1xf32>
      %c0_47 = arith.constant 0 : index
      %c0_48 = arith.constant 0 : index
      %124 = vector.load %arg11[%c0_47, %c0_48] : memref<1x1xf32, #tpu.memory_space<vmem>>, vector<1x1xf32>
      %cst_49 = arith.constant 2.000000e+00 : f32
      %125 = vector.broadcast %cst_49 : f32 to vector<1x1xf32>
      %126 = arith.divf %76, %125 : vector<1x1xf32>
      %127 = arith.mulf %120, %126 : vector<1x1xf32>
      %128 = arith.addf %124, %127 : vector<1x1xf32>
      %c0_50 = arith.constant 0 : index
      %c0_51 = arith.constant 0 : index
      %129 = vector.load %arg11[%c0_50, %c0_51] : memref<1x1xf32, #tpu.memory_space<vmem>>, vector<1x1xf32>
      tpu.vector_store %arg11[%c0_50, %c0_51], %128 {strides = array<i32>} : memref<1x1xf32, #tpu.memory_space<vmem>>, vector<1x1xf32>,
      %c0_52 = arith.constant 0 : index
      %c0_53 = arith.constant 0 : index
      %130 = vector.load %arg12[%c0_52, %c0_53] : memref<1x1xf32, #tpu.memory_space<vmem>>, vector<1x1xf32>
      %131 = arith.addf %130, %123 : vector<1x1xf32>
      %c0_54 = arith.constant 0 : index
      %c0_55 = arith.constant 0 : index
      %132 = vector.load %arg12[%c0_54, %c0_55] : memref<1x1xf32, #tpu.memory_space<vmem>>, vector<1x1xf32>
      tpu.vector_store %arg12[%c0_54, %c0_55], %131 {strides = array<i32>} : memref<1x1xf32, #tpu.memory_space<vmem>>, vector<1x1xf32>,
      %c0_56 = arith.constant 0 : index
      %c0_57 = arith.constant 0 : index
      %133 = vector.load %arg13[%c0_56, %c0_57] : memref<1x1xf32, #tpu.memory_space<vmem>>, vector<1x1xf32>
      %cst_58 = arith.constant 1.000000e+00 : f32
      %134 = vector.broadcast %cst_58 : f32 to vector<1x1xf32>
      %135 = arith.addf %133, %134 : vector<1x1xf32>
      %c0_59 = arith.constant 0 : index
      %c0_60 = arith.constant 0 : index
      %136 = vector.load %arg13[%c0_59, %c0_60] : memref<1x1xf32, #tpu.memory_space<vmem>>, vector<1x1xf32>
      tpu.vector_store %arg13[%c0_59, %c0_60], %135 {strides = array<i32>} : memref<1x1xf32, #tpu.memory_space<vmem>>, vector<1x1xf32>,
      %137 = arith.truncf %104 : vector<16x128xf32> to vector<16x128xbf16>
      %c0_61 = arith.constant 0 : index
      %138 = arith.index_cast %c0_i32_19 : i32 to index
      %c0_62 = arith.constant 0 : index
      %c0_63 = arith.constant 0 : index
      %139 = vector.load %arg7[%c0_61, %138, %c0_62, %c0_63] : memref<1x2x16x128xbf16, #tpu.memory_space<vmem>>, vector<1x1x16x128xbf16>
      %140 = vector.shape_cast %139 : vector<1x1x16x128xbf16> to vector<16x128xbf16>
      %141 = vector.shape_cast %137 : vector<16x128xbf16> to vector<1x1x16x128xbf16>
      tpu.vector_store %arg7[%c0_61, %138, %c0_62, %c0_63], %141 {strides = array<i32>} : memref<1x2x16x128xbf16, #tpu.memory_space<vmem>>, vector<1x1x16x128xbf16>,
    } else {
    }
    %c0_i32_22 = arith.constant 0 : i32
    %34 = arith.cmpi eq, %30, %c0_i32_22 : i32
    %35 = arith.extui %34 : i1 to i32
    %c0_i32_23 = arith.constant 0 : i32
    %36 = arith.cmpi ne, %35, %c0_i32_23 : i32
    scf.if %36 {
      %cst_32 = arith.constant 0.000000e+00 : bf16
      %51 = vector.broadcast %cst_32 : bf16 to vector<16x128xbf16>
      %c0_33 = arith.constant 0 : index
      %52 = arith.index_cast %c0_i32_19 : i32 to index
      %c0_34 = arith.constant 0 : index
      %c0_35 = arith.constant 0 : index
      %53 = vector.load %arg7[%c0_33, %52, %c0_34, %c0_35] : memref<1x2x16x128xbf16, #tpu.memory_space<vmem>>, vector<1x1x16x128xbf16>
      %54 = vector.shape_cast %53 : vector<1x1x16x128xbf16> to vector<16x128xbf16>
      %55 = vector.shape_cast %51 : vector<16x128xbf16> to vector<1x1x16x128xbf16>
      tpu.vector_store %arg7[%c0_33, %52, %c0_34, %c0_35], %55 {strides = array<i32>} : memref<1x2x16x128xbf16, #tpu.memory_space<vmem>>, vector<1x1x16x128xbf16>,
    } else {
    }
    %c1_i32 = arith.constant 1 : i32
    %c2_i32_24 = arith.constant 2 : i32
    %37 = arith.muli %arg1, %c2_i32_24 : i32
    %38 = arith.addi %37, %c1_i32 : i32
    %39 = arith.index_cast %arg0 : i32 to index
    %40 = arith.index_cast %38 : i32 to index
    %41 = memref.load %arg2[%39, %40] : memref<2x2xi32, #tpu.memory_space<smem>>
    %c0_i32_25 = arith.constant 0 : i32
    %42 = arith.cmpi ne, %41, %c0_i32_25 : i32
    %43 = arith.extui %42 : i1 to i32
    %c0_i32_26 = arith.constant 0 : i32
    %44 = arith.cmpi ne, %43, %c0_i32_26 : i32
    scf.if %44 {
      %51 = vector.broadcast %41 : i32 to vector<16x128xi32>
      %52 = arith.cmpi eq, %5, %51 : vector<16x128xi32>
      %53 = arith.extui %52 : vector<16x128xi1> to vector<16x128xi32>
      %54 = arith.sitofp %53 : vector<16x128xi32> to vector<16x128xf32>
      %55 = arith.mulf %54, %7 : vector<16x128xf32>
      %56 = arith.mulf %54, %9 : vector<16x128xf32>
      %57 = tpu.concatenate %54, %55, %56 in 0 : vector<16x128xf32>, vector<16x128xf32>, vector<16x128xf32> -> vector<48x128xf32>
      %cst_32 = arith.constant dense<0.000000e+00> : vector<48x2xf32>
      %58 = tpu.matmul %57, %25, %cst_32 {dimension_numbers = #tpu.dot_dimension_numbers<[1], [0], [0], [1], [0, 0, 1, 1], [], []>} : vector<48x128xf32>, vector<128x2xf32>, vector<48x2xf32> -> vector<48x2xf32>
      %59 = vector.extract_strided_slice %58 {offsets = [0, 0], sizes = [16, 1], strides = [1, 1]} : vector<48x2xf32> to vector<16x1xf32>
      %cst_33 = arith.constant dense<0.000000e+00> : vector<1xf32>
      %60 = vector.multi_reduction <add>, %59, %cst_33 [0] : vector<16x1xf32> to vector<1xf32>
      %61 = vector.shape_cast %60 : vector<1xf32> to vector<1x1xf32>
      %62 = vector.extract_strided_slice %58 {offsets = [0, 1], sizes = [16, 1], strides = [1, 1]} : vector<48x2xf32> to vector<16x1xf32>
      %cst_34 = arith.constant dense<0.000000e+00> : vector<1xf32>
      %63 = vector.multi_reduction <add>, %62, %cst_34 [0] : vector<16x1xf32> to vector<1xf32>
      %64 = vector.shape_cast %63 : vector<1xf32> to vector<1x1xf32>
      %65 = arith.mulf %59, %16 : vector<16x1xf32>
      %cst_35 = arith.constant dense<0.000000e+00> : vector<1xf32>
      %66 = vector.multi_reduction <add>, %65, %cst_35 [0] : vector<16x1xf32> to vector<1xf32>
      %67 = vector.shape_cast %66 : vector<1xf32> to vector<1x1xf32>
      %68 = vector.extract_strided_slice %58 {offsets = [16, 0], sizes = [16, 1], strides = [1, 1]} : vector<48x2xf32> to vector<16x1xf32>
      %cst_36 = arith.constant dense<0.000000e+00> : vector<1xf32>
      %69 = vector.multi_reduction <add>, %68, %cst_36 [0] : vector<16x1xf32> to vector<1xf32>
      %70 = vector.shape_cast %69 : vector<1xf32> to vector<1x1xf32>
      %71 = vector.extract_strided_slice %58 {offsets = [32, 0], sizes = [16, 1], strides = [1, 1]} : vector<48x2xf32> to vector<16x1xf32>
      %cst_37 = arith.constant dense<0.000000e+00> : vector<1xf32>
      %72 = vector.multi_reduction <add>, %71, %cst_37 [0] : vector<16x1xf32> to vector<1xf32>
      %73 = vector.shape_cast %72 : vector<1xf32> to vector<1x1xf32>
      %cst_38 = arith.constant 1.000000e+00 : f32
      %74 = vector.broadcast %cst_38 : f32 to vector<1x1xf32>
      %75 = arith.maximumf %61, %74 : vector<1x1xf32>
      %76 = tpu.reciprocal %75 {approx = true} : vector<1x1xf32> -> vector<1x1xf32>
      %77 = arith.mulf %64, %76 : vector<1x1xf32>
      %78 = arith.mulf %67, %76 : vector<1x1xf32>
      %79 = arith.mulf %70, %76 : vector<1x1xf32>
      %80 = arith.mulf %73, %76 : vector<1x1xf32>
      %cst_39 = arith.constant 1.000000e+01 : f32
      %81 = vector.broadcast %cst_39 : f32 to vector<1x1xf32>
      %82 = arith.mulf %79, %81 : vector<1x1xf32>
      %cst_40 = arith.constant 6.000000e+01 : f32
      %83 = vector.broadcast %cst_40 : f32 to vector<1x1xf32>
      %84 = arith.minimumf %82, %83 : vector<1x1xf32>
      %85 = math.exp %84 : vector<1x1xf32>
      %cst_41 = arith.constant 1.000000e+01 : f32
      %86 = vector.broadcast %cst_41 : f32 to vector<1x1xf32>
      %87 = arith.mulf %80, %86 : vector<1x1xf32>
      %cst_42 = arith.constant 6.000000e+01 : f32
      %88 = vector.broadcast %cst_42 : f32 to vector<1x1xf32>
      %89 = arith.minimumf %87, %88 : vector<1x1xf32>
      %90 = math.exp %89 : vector<1x1xf32>
      %91 = vector.broadcast %77 : vector<1x1xf32> to vector<16x128xf32>
      %92 = arith.subf %10, %91 : vector<16x128xf32>
      %93 = vector.broadcast %78 : vector<1x1xf32> to vector<16x128xf32>
      %94 = arith.subf %11, %93 : vector<16x128xf32>
      %95 = arith.mulf %92, %92 : vector<16x128xf32>
      %96 = vector.broadcast %85 : vector<1x1xf32> to vector<16x128xf32>
      %97 = arith.mulf %95, %96 : vector<16x128xf32>
      %98 = arith.mulf %94, %94 : vector<16x128xf32>
      %99 = vector.broadcast %90 : vector<1x1xf32> to vector<16x128xf32>
      %100 = arith.mulf %98, %99 : vector<16x128xf32>
      %101 = arith.addf %97, %100 : vector<16x128xf32>
      %cst_43 = arith.constant 0.000000e+00 : f32
      %102 = vector.broadcast %cst_43 : f32 to vector<16x128xf32>
      %103 = arith.subf %102, %101 : vector<16x128xf32>
      %104 = math.exp %103 : vector<16x128xf32>
      %105 = vector.broadcast %79 : vector<1x1xf32> to vector<16x128xf32>
      %106 = arith.subf %7, %105 : vector<16x128xf32>
      %107 = vector.broadcast %80 : vector<1x1xf32> to vector<16x128xf32>
      %108 = arith.subf %9, %107 : vector<16x128xf32>
      %109 = arith.subf %12, %104 : vector<16x128xf32>
      %110 = arith.mulf %106, %106 : vector<16x128xf32>
      %111 = arith.mulf %108, %108 : vector<16x128xf32>
      %112 = arith.addf %110, %111 : vector<16x128xf32>
      %113 = arith.mulf %54, %112 : vector<16x128xf32>
      %114 = arith.mulf %109, %109 : vector<16x128xf32>
      %115 = arith.mulf %54, %114 : vector<16x128xf32>
      %116 = tpu.concatenate %113, %115 in 0 : vector<16x128xf32>, vector<16x128xf32> -> vector<32x128xf32>
      %cst_44 = arith.constant dense<0.000000e+00> : vector<32x1xf32>
      %117 = tpu.matmul %116, %0, %cst_44 {dimension_numbers = #tpu.dot_dimension_numbers<[1], [0], [0], [1], [0, 0, 1, 1], [], []>} : vector<32x128xf32>, vector<128x1xf32>, vector<32x1xf32> -> vector<32x1xf32>
      %118 = vector.extract_strided_slice %117 {offsets = [0, 0], sizes = [16, 1], strides = [1, 1]} : vector<32x1xf32> to vector<16x1xf32>
      %cst_45 = arith.constant dense<0.000000e+00> : vector<1xf32>
      %119 = vector.multi_reduction <add>, %118, %cst_45 [0] : vector<16x1xf32> to vector<1xf32>
      %120 = vector.shape_cast %119 : vector<1xf32> to vector<1x1xf32>
      %121 = vector.extract_strided_slice %117 {offsets = [16, 0], sizes = [16, 1], strides = [1, 1]} : vector<32x1xf32> to vector<16x1xf32>
      %cst_46 = arith.constant dense<0.000000e+00> : vector<1xf32>
      %122 = vector.multi_reduction <add>, %121, %cst_46 [0] : vector<16x1xf32> to vector<1xf32>
      %123 = vector.shape_cast %122 : vector<1xf32> to vector<1x1xf32>
      %c0_47 = arith.constant 0 : index
      %c0_48 = arith.constant 0 : index
      %124 = vector.load %arg11[%c0_47, %c0_48] : memref<1x1xf32, #tpu.memory_space<vmem>>, vector<1x1xf32>
      %cst_49 = arith.constant 2.000000e+00 : f32
      %125 = vector.broadcast %cst_49 : f32 to vector<1x1xf32>
      %126 = arith.divf %76, %125 : vector<1x1xf32>
      %127 = arith.mulf %120, %126 : vector<1x1xf32>
      %128 = arith.addf %124, %127 : vector<1x1xf32>
      %c0_50 = arith.constant 0 : index
      %c0_51 = arith.constant 0 : index
      %129 = vector.load %arg11[%c0_50, %c0_51] : memref<1x1xf32, #tpu.memory_space<vmem>>, vector<1x1xf32>
      tpu.vector_store %arg11[%c0_50, %c0_51], %128 {strides = array<i32>} : memref<1x1xf32, #tpu.memory_space<vmem>>, vector<1x1xf32>,
      %c0_52 = arith.constant 0 : index
      %c0_53 = arith.constant 0 : index
      %130 = vector.load %arg12[%c0_52, %c0_53] : memref<1x1xf32, #tpu.memory_space<vmem>>, vector<1x1xf32>
      %131 = arith.addf %130, %123 : vector<1x1xf32>
      %c0_54 = arith.constant 0 : index
      %c0_55 = arith.constant 0 : index
      %132 = vector.load %arg12[%c0_54, %c0_55] : memref<1x1xf32, #tpu.memory_space<vmem>>, vector<1x1xf32>
      tpu.vector_store %arg12[%c0_54, %c0_55], %131 {strides = array<i32>} : memref<1x1xf32, #tpu.memory_space<vmem>>, vector<1x1xf32>,
      %c0_56 = arith.constant 0 : index
      %c0_57 = arith.constant 0 : index
      %133 = vector.load %arg13[%c0_56, %c0_57] : memref<1x1xf32, #tpu.memory_space<vmem>>, vector<1x1xf32>
      %cst_58 = arith.constant 1.000000e+00 : f32
      %134 = vector.broadcast %cst_58 : f32 to vector<1x1xf32>
      %135 = arith.addf %133, %134 : vector<1x1xf32>
      %c0_59 = arith.constant 0 : index
      %c0_60 = arith.constant 0 : index
      %136 = vector.load %arg13[%c0_59, %c0_60] : memref<1x1xf32, #tpu.memory_space<vmem>>, vector<1x1xf32>
      tpu.vector_store %arg13[%c0_59, %c0_60], %135 {strides = array<i32>} : memref<1x1xf32, #tpu.memory_space<vmem>>, vector<1x1xf32>,
      %137 = arith.truncf %104 : vector<16x128xf32> to vector<16x128xbf16>
      %c0_61 = arith.constant 0 : index
      %138 = arith.index_cast %c1_i32 : i32 to index
      %c0_62 = arith.constant 0 : index
      %c0_63 = arith.constant 0 : index
      %139 = vector.load %arg7[%c0_61, %138, %c0_62, %c0_63] : memref<1x2x16x128xbf16, #tpu.memory_space<vmem>>, vector<1x1x16x128xbf16>
      %140 = vector.shape_cast %139 : vector<1x1x16x128xbf16> to vector<16x128xbf16>
      %141 = vector.shape_cast %137 : vector<16x128xbf16> to vector<1x1x16x128xbf16>
      tpu.vector_store %arg7[%c0_61, %138, %c0_62, %c0_63], %141 {strides = array<i32>} : memref<1x2x16x128xbf16, #tpu.memory_space<vmem>>, vector<1x1x16x128xbf16>,
    } else {
    }
    %c0_i32_27 = arith.constant 0 : i32
    %45 = arith.cmpi eq, %41, %c0_i32_27 : i32
    %46 = arith.extui %45 : i1 to i32
    %c0_i32_28 = arith.constant 0 : i32
    %47 = arith.cmpi ne, %46, %c0_i32_28 : i32
    scf.if %47 {
      %cst_32 = arith.constant 0.000000e+00 : bf16
      %51 = vector.broadcast %cst_32 : bf16 to vector<16x128xbf16>
      %c0_33 = arith.constant 0 : index
      %52 = arith.index_cast %c1_i32 : i32 to index
      %c0_34 = arith.constant 0 : index
      %c0_35 = arith.constant 0 : index
      %53 = vector.load %arg7[%c0_33, %52, %c0_34, %c0_35] : memref<1x2x16x128xbf16, #tpu.memory_space<vmem>>, vector<1x1x16x128xbf16>
      %54 = vector.shape_cast %53 : vector<1x1x16x128xbf16> to vector<16x128xbf16>
      %55 = vector.shape_cast %51 : vector<16x128xbf16> to vector<1x1x16x128xbf16>
      tpu.vector_store %arg7[%c0_33, %52, %c0_34, %c0_35], %55 {strides = array<i32>} : memref<1x2x16x128xbf16, #tpu.memory_space<vmem>>, vector<1x1x16x128xbf16>,
    } else {
    }
    %c2_i32_29 = arith.constant 2 : i32
    %c0_i32_30 = arith.constant 0 : i32
    %48 = arith.cmpi eq, %arg1, %c0_i32_30 : i32
    %49 = arith.extui %48 : i1 to i32
    %c0_i32_31 = arith.constant 0 : i32
    %50 = arith.cmpi ne, %49, %c0_i32_31 : i32
    scf.if %50 {
      %c0_32 = arith.constant 0 : index
      %c0_33 = arith.constant 0 : index
      %51 = vector.load %arg13[%c0_32, %c0_33] : memref<1x1xf32, #tpu.memory_space<vmem>>, vector<1x1xf32>
      %cst_34 = arith.constant 1.000000e+00 : f32
      %52 = vector.broadcast %cst_34 : f32 to vector<1x1xf32>
      %53 = arith.maximumf %51, %52 : vector<1x1xf32>
      %c0_35 = arith.constant 0 : index
      %c0_36 = arith.constant 0 : index
      %54 = vector.load %arg11[%c0_35, %c0_36] : memref<1x1xf32, #tpu.memory_space<vmem>>, vector<1x1xf32>
      %55 = arith.divf %54, %53 : vector<1x1xf32>
      %c0_37 = arith.constant 0 : index
      %c0_38 = arith.constant 0 : index
      %56 = vector.load %arg14[%c0_37, %c0_38] : memref<1x1xf32, #tpu.memory_space<vmem>>, vector<1x1xf32>
      %c0_39 = arith.constant 0 : index
      %c0_40 = arith.constant 0 : index
      %57 = vector.load %arg12[%c0_39, %c0_40] : memref<1x1xf32, #tpu.memory_space<vmem>>, vector<1x1xf32>
      %cst_41 = arith.constant 2.000000e+02 : f32
      %58 = vector.broadcast %cst_41 : f32 to vector<1x1xf32>
      %59 = arith.mulf %58, %57 : vector<1x1xf32>
      %60 = arith.addf %56, %59 : vector<1x1xf32>
      %cst_42 = arith.constant 2.048000e+03 : f32
      %61 = vector.broadcast %cst_42 : f32 to vector<1x1xf32>
      %62 = arith.divf %60, %61 : vector<1x1xf32>
      %63 = tpu.iota {dimensions = array<i32: 0>} : vector<8x128xi32>
      %c0_i32_43 = arith.constant 0 : i32
      %64 = vector.broadcast %c0_i32_43 : i32 to vector<8x128xi32>
      %65 = arith.cmpi eq, %63, %64 : vector<8x128xi32>
      %cst_44 = arith.constant 0.000000e+00 : f32
      %66 = vector.shape_cast %55 : vector<1x1xf32> to vector<1x1xf32>
      %67 = vector.broadcast %66 : vector<1x1xf32> to vector<8x128xf32>
      %68 = vector.broadcast %cst_44 : f32 to vector<8x128xf32>
      %69 = arith.select %65, %67, %68 : vector<8x128xi1>, vector<8x128xf32>
      %c1_i32_45 = arith.constant 1 : i32
      %70 = vector.broadcast %c1_i32_45 : i32 to vector<8x128xi32>
      %71 = arith.cmpi eq, %63, %70 : vector<8x128xi32>
      %cst_46 = arith.constant 0.000000e+00 : f32
      %72 = vector.shape_cast %62 : vector<1x1xf32> to vector<1x1xf32>
      %73 = vector.broadcast %72 : vector<1x1xf32> to vector<8x128xf32>
      %74 = vector.broadcast %cst_46 : f32 to vector<8x128xf32>
      %75 = arith.select %71, %73, %74 : vector<8x128xi1>, vector<8x128xf32>
      %76 = arith.addf %69, %75 : vector<8x128xf32>
      %c2_i32_47 = arith.constant 2 : i32
      %77 = vector.broadcast %c2_i32_47 : i32 to vector<8x128xi32>
      %78 = arith.cmpi eq, %63, %77 : vector<8x128xi32>
      %c0_48 = arith.constant 0 : index
      %c0_49 = arith.constant 0 : index
      %79 = vector.load %arg15[%c0_48, %c0_49] : memref<1x1xf32, #tpu.memory_space<vmem>>, vector<1x1xf32>
      %cst_50 = arith.constant 0.000000e+00 : f32
      %80 = vector.shape_cast %79 : vector<1x1xf32> to vector<1x1xf32>
      %81 = vector.broadcast %80 : vector<1x1xf32> to vector<8x128xf32>
      %82 = vector.broadcast %cst_50 : f32 to vector<8x128xf32>
      %83 = arith.select %78, %81, %82 : vector<8x128xi1>, vector<8x128xf32>
      %84 = arith.addf %76, %83 : vector<8x128xf32>
      %c3_i32 = arith.constant 3 : i32
      %85 = vector.broadcast %c3_i32 : i32 to vector<8x128xi32>
      %86 = arith.cmpi eq, %63, %85 : vector<8x128xi32>
      %c0_51 = arith.constant 0 : index
      %c0_52 = arith.constant 0 : index
      %87 = vector.load %arg16[%c0_51, %c0_52] : memref<1x1xf32, #tpu.memory_space<vmem>>, vector<1x1xf32>
      %cst_53 = arith.constant 0.000000e+00 : f32
      %88 = vector.shape_cast %87 : vector<1x1xf32> to vector<1x1xf32>
      %89 = vector.broadcast %88 : vector<1x1xf32> to vector<8x128xf32>
      %90 = vector.broadcast %cst_53 : f32 to vector<8x128xf32>
      %91 = arith.select %86, %89, %90 : vector<8x128xi1>, vector<8x128xf32>
      %92 = arith.addf %84, %91 : vector<8x128xf32>
      %c4_i32 = arith.constant 4 : i32
      %93 = vector.broadcast %c4_i32 : i32 to vector<8x128xi32>
      %94 = arith.cmpi eq, %63, %93 : vector<8x128xi32>
      %c0_54 = arith.constant 0 : index
      %c0_55 = arith.constant 0 : index
      %95 = vector.load %arg13[%c0_54, %c0_55] : memref<1x1xf32, #tpu.memory_space<vmem>>, vector<1x1xf32>
      %cst_56 = arith.constant 0.000000e+00 : f32
      %96 = vector.shape_cast %95 : vector<1x1xf32> to vector<1x1xf32>
      %97 = vector.broadcast %96 : vector<1x1xf32> to vector<8x128xf32>
      %98 = vector.broadcast %cst_56 : f32 to vector<8x128xf32>
      %99 = arith.select %94, %97, %98 : vector<8x128xi1>, vector<8x128xf32>
      %100 = arith.addf %92, %99 : vector<8x128xf32>
      %c0_57 = arith.constant 0 : index
      %c0_58 = arith.constant 0 : index
      %c0_59 = arith.constant 0 : index
      %101 = vector.load %arg6[%c0_57, %c0_58, %c0_59] : memref<1x8x128xf32, #tpu.memory_space<vmem>>, vector<1x8x128xf32>
      %102 = vector.shape_cast %101 : vector<1x8x128xf32> to vector<8x128xf32>
      %103 = vector.shape_cast %100 : vector<8x128xf32> to vector<1x8x128xf32>
      tpu.vector_store %arg6[%c0_57, %c0_58, %c0_59], %103 {strides = array<i32>} : memref<1x8x128xf32, #tpu.memory_space<vmem>>, vector<1x8x128xf32>,
    } else {
    }
    return
  }
  func.func @transform_0(%arg0: i32, %arg1: i32, %arg2: memref<2x2xi32, #tpu.memory_space<smem>>) -> (i32, i32, i32, i32) {
    %c0_i32 = arith.constant 0 : i32
    %c0_i32_0 = arith.constant 0 : i32
    %c0_i32_1 = arith.constant 0 : i32
    %c0_i32_2 = arith.constant 0 : i32
    return %arg0, %c0_i32, %c0_i32_0, %c0_i32_1 : i32, i32, i32, i32
  }
  func.func @transform_1(%arg0: i32, %arg1: i32, %arg2: memref<2x2xi32, #tpu.memory_space<smem>>) -> (i32, i32, i32) {
    %c0_i32 = arith.constant 0 : i32
    %c0_i32_0 = arith.constant 0 : i32
    %c0_i32_1 = arith.constant 0 : i32
    return %arg0, %c0_i32, %c0_i32_0 : i32, i32, i32
  }
  func.func @transform_2(%arg0: i32, %arg1: i32, %arg2: memref<2x2xi32, #tpu.memory_space<smem>>) -> (i32, i32, i32) {
    %c0_i32 = arith.constant 0 : i32
    %c0_i32_0 = arith.constant 0 : i32
    %c0_i32_1 = arith.constant 0 : i32
    return %arg0, %c0_i32, %c0_i32_0 : i32, i32, i32
  }
  func.func @transform_3(%arg0: i32, %arg1: i32, %arg2: memref<2x2xi32, #tpu.memory_space<smem>>) -> (i32, i32, i32) {
    %c0_i32 = arith.constant 0 : i32
    %c0_i32_0 = arith.constant 0 : i32
    %c0_i32_1 = arith.constant 0 : i32
    return %arg0, %c0_i32, %c0_i32_0 : i32, i32, i32
  }
  func.func @transform_4(%arg0: i32, %arg1: i32, %arg2: memref<2x2xi32, #tpu.memory_space<smem>>) -> (i32, i32, i32, i32) {
    %c0_i32 = arith.constant 0 : i32
    %c0_i32_0 = arith.constant 0 : i32
    %c0_i32_1 = arith.constant 0 : i32
    return %arg0, %arg1, %c0_i32, %c0_i32_0 : i32, i32, i32, i32
  }
}

</mosaic_0001>

<llo_original>
// kernel: mots_seg_cls_loss.1
$region0: #{mots_seg_cls_loss.1}
  #allocation0 [shape = 'u32[]', space=smem, size = 0x4, offset = 0x4, fixed_abs, tag = 'smem constant byte address 0x4 - core index']
  #allocation1 [shape = 'u32[144,128]{1,0:T(1,128)}', space=vmem, size = 0x12000, scoped, tag = 'internal scratch']
  #allocation2 [shape = 'f32[16,128]{1,0:T(8,128)}', space=vmem, size = 0x2000, scoped, tag = 'scratch operand']
  #allocation3 [shape = 'f32[16,128]{1,0:T(8,128)}', space=vmem, size = 0x2000, scoped, tag = 'scratch operand']
  #allocation4 [shape = 'f32[16,128]{1,0:T(8,128)}', space=vmem, size = 0x2000, scoped, tag = 'scratch operand']
  #allocation5 [shape = 'f32[1,1]{1,0:T(1,128)}', space=vmem, size = 0x200, scoped, tag = 'scratch operand']
  #allocation6 [shape = 'f32[1,1]{1,0:T(1,128)}', space=vmem, size = 0x200, scoped, tag = 'scratch operand']
  #allocation7 [shape = 'f32[1,1]{1,0:T(1,128)}', space=vmem, size = 0x200, scoped, tag = 'scratch operand']
  #allocation8 [shape = 'f32[1,1]{1,0:T(1,128)}', space=vmem, size = 0x200, scoped, tag = 'scratch operand']
  #allocation9 [shape = 'f32[1,1]{1,0:T(1,128)}', space=vmem, size = 0x200, scoped, tag = 'scratch operand']
  #allocation10 [shape = 'f32[1,1]{1,0:T(1,128)}', space=vmem, size = 0x200, scoped, tag = 'scratch operand']
  #allocation11 [shape = 's32[1]{0}', space=sflag, size = 0x4, scoped, tag = 'scoped memory for mots_seg_cls_loss.1']
  #allocation12 [shape = 'u8[1024]{0}', space=smem, size = 0x400, scoped, tag = 'prefetched SMEM operand 0']
  %s0 = inlined_call_operand.hbm [shape: s32[2,2], index: 0, kind: input, shape index: {}]
  %s1 = inlined_call_operand.hbm [shape: f32[2,7,16,128], index: 1, kind: input, shape index: {}]
  %s2 = inlined_call_operand.hbm [shape: s32[2,16,128], index: 2, kind: input, shape index: {}]
  %s3 = inlined_call_operand.hbm [shape: s32[2,16,128], index: 3, kind: input, shape index: {}]
  %s4 = inlined_call_operand.vmem [shape: f32[2,8,128], index: 4, kind: output, shape index: {0}]
  %s5 = inlined_call_operand.vmem [shape: bf16[2,2,16,128], index: 5, kind: output, shape index: {1}]
  %6 = xla_tuple %s4, %s5
  %s7 = sld [smem:[#allocation0]]
  $region89: #{mots_seg_cls_loss.1} parent=0
    _
  %s9 = ssub.s32 1, %s7
  %s10 = scalar_select 0, %s9, %s7
  %12 = dma.hbm_to_smem %s0, 32, [#allocation12], [#allocation11]
  %13 = dma.done [#allocation11], 32
  %14 = sfence
  $region1: #{mots_seg_cls_loss.1} parent=0
    #allocation13 [shape = 'u8[114688]{0}', space=vmem, size = 0x1c000, scoped, tag = 'input window, operand 1']
    #allocation14 [shape = 's32[2]{0}', space=sflag, size = 0x8, scoped, tag = 'scoped memory for mots_seg_cls_loss.1']
    #allocation15 [shape = 'u8[16384]{0}', space=vmem, size = 0x4000, scoped, tag = 'input window, operand 2']
    #allocation16 [shape = 's32[2]{0}', space=sflag, size = 0x8, scoped, tag = 'scoped memory for mots_seg_cls_loss.1']
    #allocation17 [shape = 'u8[16384]{0}', space=vmem, size = 0x4000, scoped, tag = 'input window, operand 3']
    %15 = vsyncpa [#allocation14], 0
    %s16 = scalar_lea.sflag [#allocation14], 1
    %17 = vsyncpa %s16, 0
    %18 = vsyncpa [#allocation16], 0
    %s19 = scalar_lea.sflag [#allocation16], 1
    %20 = vsyncpa %s19, 0
    loop: start=0, step=1, limit=4
    $region2: #{mots_seg_cls_loss.1} parent=1 // loop_pre_header
      _
    $region3: #{mots_seg_cls_loss.1} parent=1 // loop_header
      %s22 = sphi 0, %s26
      %p23 = scmp.ge.s32.totalorder %s22, 4
      %s29 = sphi 0, %s41
      %s30 = sphi 0, %s37
      %s31 = sphi 0, %s29
      %s32 = sphi 0, %s30
      %s33 = sphi 0, %s31
      %s34 = sphi 0, %s32
      %s44 = sphi 0, %s46
      %s47 = sphi 0, %s44
      %s48 = sphi 0, %s47
      %s64 = sphi 0, %s48
      %s70 = sphi 0, %s72
      %s73 = sphi 0, %s70
      %s74 = sphi 0, %s73
      %s90 = sphi 0, %s74
      %s96 = sphi 0, %s98
      %s99 = sphi 0, %s96
      %s100 = sphi 0, %s99
      %s116 = sphi 0, %s100
      %s122 = sphi 0, %s124
      %s125 = sphi 0, %s122
      %s126 = sphi 0, %s125
      %s142 = sphi 0, %s126
      %s150 = sphi 0, %s152
      %s153 = sphi 0, %s150
      %s154 = sphi 0, %s153
      %s170 = sphi 0, %s154
    $region4: #{mots_seg_cls_loss.1} parent=1 // loop_header_branch
      %25 = sbr.rel (%p23) target = $region8
    $region5: #{mots_seg_cls_loss.1} parent=1 // loop_body
      %s27 = ssub.s32 %s22, 1
      %s28 = ssub.s32 %s22, 2
      %s35 = sadd.s32 1, %s30
      %p36 = scmp.ge.s32.totalorder %s35, 1
      %s37 = scalar_select %p36, 0, %s35
      %s38 = sadd.s32 1, %s29
      %s39 = scalar_select %p36, %s38, %s29
      %p40 = scmp.ge.s32.totalorder %s39, 2
      %s41 = scalar_select %p40, 0, %s39
      %s42 = ssub.s32 %s29, %s41
      %p43 = scmp.eq.s32.totalorder %s42, 0
      %s45 = sadd.s32 %s44, 1
      %s46 = scalar_select %p43, %s44, %s45
      %p49 = pneg %p43
      %p50 = scmp.eq.s32.totalorder %s22, 1
      %p51 = por %p49, %p50
      %p52 = scmp.ne.s32.totalorder %s44, %s47
      %p53 = scmp.eq.s32.totalorder %s22, 0
      %p54 = por %p52, %p53
      %p55 = scmp.ne.s32.totalorder %s44, %s47
      %p56 = scmp.eq.s32.totalorder %s27, 1
      %p57 = por %p55, %p56
      %p58 = scmp.ne.s32.totalorder %s47, %s48
      %p59 = scmp.eq.s32.totalorder %s27, 0
      %p60 = por %p58, %p59
      %p61 = scmp.ne.s32.totalorder %s47, %s48
      %p62 = scmp.eq.s32.totalorder %s28, 1
      %p63 = por %p61, %p62
      %p65 = scmp.ne.s32.totalorder %s48, %s64
      %p66 = scmp.eq.s32.totalorder %s28, 0
      %p67 = por %p65, %p66
      %s68 = ssub.s32 %s29, %s41
      %p69 = scmp.eq.s32.totalorder %s68, 0
      %s71 = sadd.s32 %s70, 1
      %s72 = scalar_select %p69, %s70, %s71
      %p75 = pneg %p69
      %p76 = scmp.eq.s32.totalorder %s22, 1
      %p77 = por %p75, %p76
      %p78 = scmp.ne.s32.totalorder %s70, %s73
      %p79 = scmp.eq.s32.totalorder %s22, 0
      %p80 = por %p78, %p79
      %p81 = scmp.ne.s32.totalorder %s70, %s73
      %p82 = scmp.eq.s32.totalorder %s27, 1
      %p83 = por %p81, %p82
      %p84 = scmp.ne.s32.totalorder %s73, %s74
      %p85 = scmp.eq.s32.totalorder %s27, 0
      %p86 = por %p84, %p85
      %p87 = scmp.ne.s32.totalorder %s73, %s74
      %p88 = scmp.eq.s32.totalorder %s28, 1
      %p89 = por %p87, %p88
      %p91 = scmp.ne.s32.totalorder %s74, %s90
      %p92 = scmp.eq.s32.totalorder %s28, 0
      %p93 = por %p91, %p92
      %s94 = ssub.s32 %s29, %s41
      %p95 = scmp.eq.s32.totalorder %s94, 0
      %s97 = sadd.s32 %s96, 1
      %s98 = scalar_select %p95, %s96, %s97
      %p101 = pneg %p95
      %p102 = scmp.eq.s32.totalorder %s22, 1
      %p103 = por %p101, %p102
      %p104 = scmp.ne.s32.totalorder %s96, %s99
      %p105 = scmp.eq.s32.totalorder %s22, 0
      %p106 = por %p104, %p105
      %p107 = scmp.ne.s32.totalorder %s96, %s99
      %p108 = scmp.eq.s32.totalorder %s27, 1
      %p109 = por %p107, %p108
      %p110 = scmp.ne.s32.totalorder %s99, %s100
      %p111 = scmp.eq.s32.totalorder %s27, 0
      %p112 = por %p110, %p111
      %p113 = scmp.ne.s32.totalorder %s99, %s100
      %p114 = scmp.eq.s32.totalorder %s28, 1
      %p115 = por %p113, %p114
      %p117 = scmp.ne.s32.totalorder %s100, %s116
      %p118 = scmp.eq.s32.totalorder %s28, 0
      %p119 = por %p117, %p118
      %s120 = ssub.s32 %s29, %s41
      %p121 = scmp.eq.s32.totalorder %s120, 0
      %s123 = sadd.s32 %s122, 1
      %s124 = scalar_select %p121, %s122, %s123
      %p127 = pneg %p121
      %p128 = scmp.eq.s32.totalorder %s22, 1
      %p129 = por %p127, %p128
      %p130 = scmp.ne.s32.totalorder %s122, %s125
      %p131 = scmp.eq.s32.totalorder %s22, 0
      %p132 = por %p130, %p131
      %p133 = scmp.ne.s32.totalorder %s122, %s125
      %p134 = scmp.eq.s32.totalorder %s27, 1
      %p135 = por %p133, %p134
      %p136 = scmp.ne.s32.totalorder %s125, %s126
      %p137 = scmp.eq.s32.totalorder %s27, 0
      %p138 = por %p136, %p137
      %p139 = scmp.ne.s32.totalorder %s125, %s126
      %p140 = scmp.eq.s32.totalorder %s28, 1
      %p141 = por %p139, %p140
      %p143 = scmp.ne.s32.totalorder %s126, %s142
      %p144 = scmp.eq.s32.totalorder %s28, 0
      %p145 = por %p143, %p144
      %s146 = ssub.s32 %s29, %s41
      %s147 = ssub.s32 %s30, %s37
      %s148 = sor.u32 %s146, %s147
      %p149 = scmp.eq.s32.totalorder %s148, 0
      %s151 = sadd.s32 %s150, 1
      %s152 = scalar_select %p149, %s150, %s151
      %p155 = pneg %p149
      %p156 = scmp.eq.s32.totalorder %s22, 1
      %p157 = por %p155, %p156
      %p158 = scmp.ne.s32.totalorder %s150, %s153
      %p159 = scmp.eq.s32.totalorder %s22, 0
      %p160 = por %p158, %p159
      %p161 = scmp.ne.s32.totalorder %s150, %s153
      %p162 = scmp.eq.s32.totalorder %s27, 1
      %p163 = por %p161, %p162
      %p164 = scmp.ne.s32.totalorder %s153, %s154
      %p165 = scmp.eq.s32.totalorder %s27, 0
      %p166 = por %p164, %p165
      %p167 = scmp.ne.s32.totalorder %s153, %s154
      %p168 = scmp.eq.s32.totalorder %s28, 1
      %p169 = por %p167, %p168
      %p171 = scmp.ne.s32.totalorder %s154, %s170
      %p172 = scmp.eq.s32.totalorder %s28, 0
      %p173 = por %p171, %p172
      %p174 = scmp.le.s32.totalorder 1, %s22
      %p175 = scmp.lt.s32.totalorder %s22, 3
      %p176 = pnand %p174, %p175
      %p177 = pneg %p176
      // Predicated region
      $region9: #{mots_seg_cls_loss.1} parent=5 // pred_check
        _
      $region10: #{mots_seg_cls_loss.1} parent=5 // pred_check_branch
        %179 = sbr.rel (%p176) target = $region12
      $region11: #{mots_seg_cls_loss.1} parent=5 // pred_region
        %s180 = ssub.s32 %s22, 1
      $region12: #{mots_seg_cls_loss.1} parent=5 // pred_fallthru
        _
      %p181 = scmp.lt.s32.totalorder %s22, 2
      // Predicated region
      $region13: #{mots_seg_cls_loss.1} parent=5 // pred_check
        %p182 = pneg %p181
      $region14: #{mots_seg_cls_loss.1} parent=5 // pred_check_branch
        %184 = sbr.rel (%p182) target = $region16
      $region15: #{mots_seg_cls_loss.1} parent=5 // pred_region
        // Predicated region
        $region17: #{mots_seg_cls_loss.1} parent=15 // pred_check
          %p185 = pneg %p54
        $region18: #{mots_seg_cls_loss.1} parent=15 // pred_check_branch
          %187 = sbr.rel (%p185) target = $region20
        $region19: #{mots_seg_cls_loss.1} parent=15 // pred_region
          %s188 = sand.u32 %s44, 1
          %s189 = scalar_lea.sflag [#allocation14], %s188
          %s190 = sand.u32 %s44, 1
          %s191 = smul.addr %s190, 112
          %s192 = scalar_lea.vmem [#allocation13], %s191
          %s194 = ssub.s32 1792, 1792
          %195 = vsyncadd %s189, %s194
          %s196 = smul.addr %s29, 14
          %s197 = smul.addr %s196, 128
          %s198 = scalar_lea.hbm %s1, %s197
          %s199 = sshll.u32 %s192, 4
          %s200 = int_to_ptr.vmem [resolvable:$true] %s199
          %205 = dma.hbm_to_vmem [thread:$0]  %s198, 1792, %s200, %s189, 128, 128, 8
        $region20: #{mots_seg_cls_loss.1} parent=15 // pred_fallthru
          _
        // Predicated region
        $region21: #{mots_seg_cls_loss.1} parent=15 // pred_check
          %p206 = pneg %p80
        $region22: #{mots_seg_cls_loss.1} parent=15 // pred_check_branch
          %208 = sbr.rel (%p206) target = $region24
        $region23: #{mots_seg_cls_loss.1} parent=15 // pred_region
          %s209 = sand.u32 %s22, 1
          %s210 = scalar_lea.sflag [#allocation16], %s209
          %s211 = sand.u32 %s70, 1
          %s212 = smul.addr %s211, 16
          %s213 = scalar_lea.vmem [#allocation15], %s212
          %s215 = ssub.s32 256, 256
          %216 = vsyncadd %s210, %s215
          %s217 = smul.addr %s29, 2
          %s218 = smul.addr %s217, 128
          %s219 = scalar_lea.hbm %s2, %s218
          %s220 = sshll.u32 %s213, 4
          %s221 = int_to_ptr.vmem [resolvable:$true] %s220
          %226 = dma.hbm_to_vmem [thread:$0]  %s219, 256, %s221, %s210, 128, 128, 8
        $region24: #{mots_seg_cls_loss.1} parent=15 // pred_fallthru
          _
        // Predicated region
        $region25: #{mots_seg_cls_loss.1} parent=15 // pred_check
          %p227 = pneg %p106
        $region26: #{mots_seg_cls_loss.1} parent=15 // pred_check_branch
          %229 = sbr.rel (%p227) target = $region28
        $region27: #{mots_seg_cls_loss.1} parent=15 // pred_region
          %s230 = sand.u32 %s22, 1
          %s231 = scalar_lea.sflag [#allocation16], %s230
          %s232 = sand.u32 %s96, 1
          %s233 = smul.addr %s232, 16
          %s234 = scalar_lea.vmem [#allocation17], %s233
          %s236 = ssub.s32 256, 256
          %237 = vsyncadd %s231, %s236
          %s238 = smul.addr %s29, 2
          %s239 = smul.addr %s238, 128
          %s240 = scalar_lea.hbm %s3, %s239
          %s241 = sshll.u32 %s234, 4
          %s242 = int_to_ptr.vmem [resolvable:$true] %s241
          %247 = dma.hbm_to_vmem [thread:$0]  %s240, 256, %s242, %s231, 128, 128, 8
        $region28: #{mots_seg_cls_loss.1} parent=15 // pred_fallthru
          _
      $region16: #{mots_seg_cls_loss.1} parent=5 // pred_fallthru
        _
      %p248 = scmp.le.s32.totalorder 1, %s22
      %p249 = scmp.lt.s32.totalorder %s22, 3
      %p250 = pnand %p248, %p249
      %p251 = pneg %p250
      // Predicated region
      $region29: #{mots_seg_cls_loss.1} parent=5 // pred_check
        _
      $region30: #{mots_seg_cls_loss.1} parent=5 // pred_check_branch
        %253 = sbr.rel (%p250) target = $region32
      $region31: #{mots_seg_cls_loss.1} parent=5 // pred_region
        %s254 = ssub.s32 %s22, 1
        %s255 = sand.u32 %s47, 1
        %s256 = scalar_lea.sflag [#allocation14], %s255
        %s257 = sand.u32 %s47, 1
        %s258 = smul.addr %s257, 112
        %s259 = scalar_lea.vmem [#allocation13], %s258
        // Predicated region
        $region33: #{mots_seg_cls_loss.1} parent=31 // pred_check
          %p260 = pneg %p60
        $region34: #{mots_seg_cls_loss.1} parent=31 // pred_check_branch
          %262 = sbr.rel (%p260) target = $region36
        $region35: #{mots_seg_cls_loss.1} parent=31 // pred_region
          %263 = dma.done %s256, 1792
        $region36: #{mots_seg_cls_loss.1} parent=31 // pred_fallthru
          _
        %s264 = sand.u32 %s27, 1
        %s265 = scalar_lea.sflag [#allocation16], %s264
        %s266 = sand.u32 %s73, 1
        %s267 = smul.addr %s266, 16
        %s268 = scalar_lea.vmem [#allocation15], %s267
        // Predicated region
        $region37: #{mots_seg_cls_loss.1} parent=31 // pred_check
          %p269 = pneg %p86
        $region38: #{mots_seg_cls_loss.1} parent=31 // pred_check_branch
          %271 = sbr.rel (%p269) target = $region40
        $region39: #{mots_seg_cls_loss.1} parent=31 // pred_region
          %272 = dma.done %s265, 256
        $region40: #{mots_seg_cls_loss.1} parent=31 // pred_fallthru
          _
        %s273 = sand.u32 %s27, 1
        %s274 = scalar_lea.sflag [#allocation16], %s273
        %s275 = sand.u32 %s99, 1
        %s276 = smul.addr %s275, 16
        %s277 = scalar_lea.vmem [#allocation17], %s276
        // Predicated region
        $region41: #{mots_seg_cls_loss.1} parent=31 // pred_check
          %p278 = pneg %p112
        $region42: #{mots_seg_cls_loss.1} parent=31 // pred_check_branch
          %280 = sbr.rel (%p278) target = $region44
        $region43: #{mots_seg_cls_loss.1} parent=31 // pred_region
          %281 = dma.done %s274, 256
        $region44: #{mots_seg_cls_loss.1} parent=31 // pred_fallthru
          _
        %s282 = sand.u32 %s47, 1
        %s283 = scalar_lea.sflag [#allocation14], %s282
        %s284 = sand.u32 %s47, 1
        %s285 = smul.addr %s284, 112
        %s286 = scalar_lea.vmem [#allocation13], %s285
        %p287 = pneg %p60
        %p288 = pneg %p57
        %s289 = sand.u32 %s27, 1
        %s290 = scalar_lea.sflag [#allocation16], %s289
        %s291 = sand.u32 %s73, 1
        %s292 = smul.addr %s291, 16
        %s293 = scalar_lea.vmem [#allocation15], %s292
        %p294 = pneg %p86
        %p295 = pneg %p83
        %s296 = sand.u32 %s27, 1
        %s297 = scalar_lea.sflag [#allocation16], %s296
        %s298 = sand.u32 %s99, 1
        %s299 = smul.addr %s298, 16
        %s300 = scalar_lea.vmem [#allocation17], %s299
        %p301 = pneg %p112
        %p302 = pneg %p109
        %p303 = pneg %p138
        %p304 = pneg %p135
        %p305 = scmp.lt.s32.totalorder %s31, 1
        %s306 = scalar_select %p305, %s31, 1
        %s307 = smul.addr %s306, 8
        %s308 = scalar_lea.vmem %s4, %s307
        %p309 = pneg %p166
        %p310 = pneg %p163
        %s311 = smul.u32 2, %s32
        %p312 = scmp.lt.s32.totalorder %s31, 1
        %s313 = scalar_select %p312, %s31, 1
        %p314 = scmp.lt.s32.totalorder %s311, 1
        %s315 = scalar_select %p314, %s311, 1
        %s316 = smul.addr %s315, 2
        %s317 = smul.addr %s313, 4
        %s318 = sadd.s32 %s316, %s317
        %s319 = smul.addr %s318, 4
        %s320 = scalar_lea.vmem %s5, %s319
        %p321 = scmp.lt.s32.totalorder %s31, 1
        %s322 = scalar_select %p321, %s31, 1
        %s323 = smul.addr %s322, 8
        %s324 = scalar_lea.vmem %s4, %s323
        %s325 = smul.u32 2, %s32
        %p326 = scmp.lt.s32.totalorder %s31, 1
        %s327 = scalar_select %p326, %s31, 1
        %p328 = scmp.lt.s32.totalorder %s325, 1
        %s329 = scalar_select %p328, %s325, 1
        %s330 = smul.addr %s329, 2
        %s331 = smul.addr %s327, 4
        %s332 = sadd.s32 %s330, %s331
        %s333 = smul.addr %s332, 4
        %s334 = scalar_lea.vmem %s5, %s333
        %s335 = smul.u32 2, %s32
        %p337 = scmp.eq.s32.totalorder %s32, 0
        // Predicated region
        $region45: #{mots_seg_cls_loss.1} parent=31 // pred_check
          %p338 = pneg %p337
        $region46: #{mots_seg_cls_loss.1} parent=31 // pred_check_branch
          %340 = sbr.rel (%p338) target = $region48
        $region47: #{mots_seg_cls_loss.1} parent=31 // pred_region
          %v341 = vlaneseq
          %v342 = vand.u32 %v341, 127
          %v343 = vcvt.s32.f32 %v342
          %v344 = vmul.f32 %v343, 0.0009770396
          %v345 = vlaneseq
          %v346 = vshrl.u32 %v345, 7
          %v347 = vadd.s32 %v346, 8
          %v348 = vcvt.s32.f32 %v346
          %v349 = vcvt.s32.f32 %v347
          %v350 = vmul.f32 %v348, 0.0009775171
          %v351 = vmul.f32 %v349, 0.0009775171
          %v352 = vld [vmem:[%s259] sm:$0xff]
          %v353 = vld [vmem:[%s259 + $0x8] sm:$0xff]
          %v354 = vtanh.pop %v352
          %v355 = vtanh.pop %v353
          %v356 = vadd.f32 %v354, %v344
          %v357 = vadd.f32 %v355, %v344
          %358 = vst [vmem:[#allocation2] sm:$0xff] %v356
          %359 = vst [vmem:[#allocation2 + $0x8] sm:$0xff] %v357
          %s360 = scalar_lea.vmem %s259, 16 [#allocation13]
          %v361 = vld [vmem:[%s360] sm:$0xff]
          %v362 = vld [vmem:[%s360 + $0x8] sm:$0xff]
          %v363 = vtanh.pop %v361
          %v364 = vtanh.pop %v362
          %v365 = vadd.f32 %v363, %v350
          %v366 = vadd.f32 %v364, %v351
          %367 = vst [vmem:[#allocation3] sm:$0xff] %v365
          %368 = vst [vmem:[#allocation3 + $0x8] sm:$0xff] %v366
          %s369 = scalar_lea.vmem %s259, 64 [#allocation13]
          %v370 = vld [vmem:[%s369] sm:$0xff]
          %v371 = vld [vmem:[%s369 + $0x8] sm:$0xff]
          %v372 = vsub.f32 0.0, %v370
          %v373 = vsub.f32 0.0, %v371
          %v374 = vmul.f32 %v372, 1.442695
          %v375 = vpow.pop %v374
          %v376 = vmul.f32 %v373, 1.442695
          %v377 = vpow.pop %v376
          %v378 = vadd.f32 %v375, 1.0
          %v379 = vadd.f32 %v377, 1.0
          %v380 = vrcp.pop %v378
          %v381 = vrcp.pop %v379
          %382 = vst [vmem:[#allocation4] sm:$0xff] %v380
          %383 = vst [vmem:[#allocation4 + $0x8] sm:$0xff] %v381
          %v384 = vld [vmem:[%s277] sm:$0xff]
          %v385 = vld [vmem:[%s277 + $0x8] sm:$0xff]
          %vm386 = vcmp.eq.s32.totalorder %v384, 0
          %vm387 = vcmp.eq.s32.totalorder %v385, 0
          %v388 = vsel %vm386, 1, 0
          %v389 = vsel %vm387, 1, 0
          %v390 = vcvt.s32.f32 %v388
          %v391 = vcvt.s32.f32 %v389
          %v392 = vmul.f32 %v390, %v380
          %v393 = vmul.f32 %v391, %v381
          %v394 = vmul.f32 %v392, %v380
          %v395 = vmul.f32 %v393, %v381
          %396 = vmatprep.subr.mxu0 0.0
          %397 = vmatpush1.msra.mxu0 1.0
          %398 = vmatprep.subr.mxu0 0.0
          %399 = vmatpush1.msra.mxu0 1.0
          %400 = vmatprep.subr.mxu0 0.0
          %401 = vmatpush1.msra.mxu0 1.0
          %402 = vmatprep.subr.mxu0 0.0
          %403 = vmatpush1.msra.mxu0 1.0
          %404 = vmatprep.subr.mxu0 0.0
          %405 = vmatpush1.msra.mxu0 1.0
          %406 = vmatprep.subr.mxu0 0.0
          %407 = vmatpush1.msra.mxu0 1.0
          %408 = vmatprep.subr.mxu0 0.0
          %409 = vmatpush1.msra.mxu0 1.0
          %410 = vmatprep.subr.mxu0 0.0
          %411 = vmatpush1.msra.mxu0 1.0
          %412 = vmatprep.subr.mxu0 0.0
          %413 = vmatpush1.msra.mxu0 1.0
          %414 = vmatprep.subr.mxu0 0.0
          %415 = vmatpush1.msra.mxu0 1.0
          %416 = vmatprep.subr.mxu0 0.0
          %417 = vmatpush1.msra.mxu0 1.0
          %418 = vmatprep.subr.mxu0 0.0
          %419 = vmatpush1.msra.mxu0 1.0
          %420 = vmatprep.subr.mxu0 0.0
          %421 = vmatpush1.msra.mxu0 1.0
          %422 = vmatprep.subr.mxu0 0.0
          %423 = vmatpush1.msra.mxu0 1.0
          %424 = vmatprep.subr.mxu0 0.0
          %425 = vmatpush1.msra.mxu0 1.0
          %426 = vmatprep.subr.mxu0 0.0
          %427 = vmatpush1.msra.mxu0 1.0
          %428 = vmatprep.subr.mxu0 0.0
          %429 = vmatpush2.msra.mxu0 0.0
          %430 = vmatprep.subr.mxu0 0.0
          %431 = vmatpush2.msra.mxu0 0.0
          %432 = vmatprep.subr.mxu0 0.0
          %433 = vmatpush2.msra.mxu0 0.0
          %434 = vmatprep.subr.mxu0 0.0
          %435 = vmatpush2.msra.mxu0 0.0
          %436 = vmatprep.subr.mxu0 0.0
          %437 = vmatpush2.msra.mxu0 0.0
          %438 = vmatprep.subr.mxu0 0.0
          %439 = vmatpush2.msra.mxu0 0.0
          %440 = vmatprep.subr.mxu0 0.0
          %441 = vmatpush2.msra.mxu0 0.0
          %442 = vmatprep.subr.mxu0 0.0
          %443 = vmatpush2.msra.mxu0 0.0
          %444 = vmatprep.subr.mxu0 0.0
          %445 = vmatpush2.msra.mxu0 0.0
          %446 = vmatprep.subr.mxu0 0.0
          %447 = vmatpush2.msra.mxu0 0.0
          %448 = vmatprep.subr.mxu0 0.0
          %449 = vmatpush2.msra.mxu0 0.0
          %450 = vmatprep.subr.mxu0 0.0
          %451 = vmatpush2.msra.mxu0 0.0
          %452 = vmatprep.subr.mxu0 0.0
          %453 = vmatpush2.msra.mxu0 0.0
          %454 = vmatprep.subr.mxu0 0.0
          %455 = vmatpush2.msra.mxu0 0.0
          %456 = vmatprep.subr.mxu0 0.0
          %457 = vmatpush2.msra.mxu0 0.0
          %458 = vmatprep.subr.mxu0 0.0
          %459 = vmatpush2.msra.mxu0 0.0
          %460 = vmatprep.mubr.f32.mxu0 0.0
          %461 = vmatmul.mubr.f32.gmra.mxu0 %v394
          %v462 = vpop.f32.mrf.mxu0
          %v463 = vadd.f32 0.0, %v462
          %v464 = vpop.f32.mrf.mxu0
          %465 = vmatprep.mubr.f32.mxu0 0.0
          %466 = vmatmul.mubr.f32.gmra.mxu0 %v395
          %v467 = vpop.f32.mrf.mxu0
          %v468 = vadd.f32 0.0, %v467
          %v469 = vpop.f32.mrf.mxu0
          %470 = vdwg.mxu0
          %vm471 = vcmask 7168
          %v472 = vsel %vm471, %v463, 0.0
          %v473 = vsel %vm471, %v468, 0.0
          %v474 = vadd.f32 %v472, %v473
          %v475 = vrot.slane %v474, 4
          %v476 = vadd.f32 %v474, %v475
          %v477 = vrot.slane %v476, 2
          %v478 = vadd.f32 %v476, %v477
          %v479 = vrot.slane %v478, 1
          %v480 = vadd.f32 %v478, %v479
          %vm481 = vcmask 0
          %482 = vst.msk [vmem:[#allocation8] sm:$0x1] %vm481, %v480
          %vm483 = vcmp.lt.s32.totalorder %v384, 2
          %vm484 = vcmp.lt.s32.totalorder %v385, 2
          %v485 = vsel %vm483, 1, 0
          %v486 = vsel %vm484, 1, 0
          %v487 = vcvt.s32.f32 %v485
          %v488 = vcvt.s32.f32 %v486
          %s489 = scalar_lea.vmem %s259, 80 [#allocation13]
          %v490 = vld [vmem:[%s489] sm:$0xff]
          %v491 = vld [vmem:[%s489 + $0x8] sm:$0xff]
          %s492 = scalar_lea.vmem %s259, 96 [#allocation13]
          %v493 = vld [vmem:[%s492] sm:$0xff]
          %v494 = vld [vmem:[%s492 + $0x8] sm:$0xff]
          %v495 = vmax.f32 %v490, %v493
          %v496 = vmax.f32 %v491, %v494
          %v497 = vsub.f32 %v490, %v495
          %v498 = vsub.f32 %v491, %v496
          %v499 = vmul.f32 %v497, 1.442695
          %v500 = vpow.pop %v499
          %v501 = vmul.f32 %v498, 1.442695
          %v502 = vpow.pop %v501
          %v503 = vsub.f32 %v493, %v495
          %v504 = vsub.f32 %v494, %v496
          %v505 = vmul.f32 %v503, 1.442695
          %v506 = vpow.pop %v505
          %v507 = vmul.f32 %v504, 1.442695
          %v508 = vpow.pop %v507
          %v509 = vadd.f32 %v500, %v506
          %v510 = vadd.f32 %v502, %v508
          %v511 = vlog2.pop %v509
          %v512 = vmul.f32 %v511, 0.6931472
          %v513 = vlog2.pop %v510
          %v514 = vmul.f32 %v513, 0.6931472
          %v515 = vadd.f32 %v495, %v512
          %v516 = vadd.f32 %v496, %v514
          %vm517 = vcmp.eq.s32.totalorder %v384, 1
          %vm518 = vcmp.eq.s32.totalorder %v385, 1
          %v519 = vsel %vm517, %v493, %v490
          %v520 = vsel %vm518, %v494, %v491
          %v521 = vsub.f32 %v515, %v519
          %v522 = vsub.f32 %v516, %v520
          %v523 = vmul.f32 %v487, %v521
          %v524 = vmul.f32 %v488, %v522
          %525 = vmatprep.subr.mxu0 0.0
          %526 = vmatpush1.msra.mxu0 1.0
          %527 = vmatprep.subr.mxu0 0.0
          %528 = vmatpush1.msra.mxu0 1.0
          %529 = vmatprep.subr.mxu0 0.0
          %530 = vmatpush1.msra.mxu0 1.0
          %531 = vmatprep.subr.mxu0 0.0
          %532 = vmatpush1.msra.mxu0 1.0
          %533 = vmatprep.subr.mxu0 0.0
          %534 = vmatpush1.msra.mxu0 1.0
          %535 = vmatprep.subr.mxu0 0.0
          %536 = vmatpush1.msra.mxu0 1.0
          %537 = vmatprep.subr.mxu0 0.0
          %538 = vmatpush1.msra.mxu0 1.0
          %539 = vmatprep.subr.mxu0 0.0
          %540 = vmatpush1.msra.mxu0 1.0
          %541 = vmatprep.subr.mxu0 0.0
          %542 = vmatpush1.msra.mxu0 1.0
          %543 = vmatprep.subr.mxu0 0.0
          %544 = vmatpush1.msra.mxu0 1.0
          %545 = vmatprep.subr.mxu0 0.0
          %546 = vmatpush1.msra.mxu0 1.0
          %547 = vmatprep.subr.mxu0 0.0
          %548 = vmatpush1.msra.mxu0 1.0
          %549 = vmatprep.subr.mxu0 0.0
          %550 = vmatpush1.msra.mxu0 1.0
          %551 = vmatprep.subr.mxu0 0.0
          %552 = vmatpush1.msra.mxu0 1.0
          %553 = vmatprep.subr.mxu0 0.0
          %554 = vmatpush1.msra.mxu0 1.0
          %555 = vmatprep.subr.mxu0 0.0
          %556 = vmatpush1.msra.mxu0 1.0
          %557 = vmatprep.subr.mxu0 0.0
          %558 = vmatpush2.msra.mxu0 0.0
          %559 = vmatprep.subr.mxu0 0.0
          %560 = vmatpush2.msra.mxu0 0.0
          %561 = vmatprep.subr.mxu0 0.0
          %562 = vmatpush2.msra.mxu0 0.0
          %563 = vmatprep.subr.mxu0 0.0
          %564 = vmatpush2.msra.mxu0 0.0
          %565 = vmatprep.subr.mxu0 0.0
          %566 = vmatpush2.msra.mxu0 0.0
          %567 = vmatprep.subr.mxu0 0.0
          %568 = vmatpush2.msra.mxu0 0.0
          %569 = vmatprep.subr.mxu0 0.0
          %570 = vmatpush2.msra.mxu0 0.0
          %571 = vmatprep.subr.mxu0 0.0
          %572 = vmatpush2.msra.mxu0 0.0
          %573 = vmatprep.subr.mxu0 0.0
          %574 = vmatpush2.msra.mxu0 0.0
          %575 = vmatprep.subr.mxu0 0.0
          %576 = vmatpush2.msra.mxu0 0.0
          %577 = vmatprep.subr.mxu0 0.0
          %578 = vmatpush2.msra.mxu0 0.0
          %579 = vmatprep.subr.mxu0 0.0
          %580 = vmatpush2.msra.mxu0 0.0
          %581 = vmatprep.subr.mxu0 0.0
          %582 = vmatpush2.msra.mxu0 0.0
          %583 = vmatprep.subr.mxu0 0.0
          %584 = vmatpush2.msra.mxu0 0.0
          %585 = vmatprep.subr.mxu0 0.0
          %586 = vmatpush2.msra.mxu0 0.0
          %587 = vmatprep.subr.mxu0 0.0
          %588 = vmatpush2.msra.mxu0 0.0
          %589 = vmatprep.mubr.f32.mxu0 0.0
          %590 = vmatmul.mubr.f32.gmra.mxu0 %v523
          %v591 = vpop.f32.mrf.mxu0
          %v592 = vadd.f32 0.0, %v591
          %v593 = vpop.f32.mrf.mxu0
          %594 = vmatprep.mubr.f32.mxu0 0.0
          %595 = vmatmul.mubr.f32.gmra.mxu0 %v524
          %v596 = vpop.f32.mrf.mxu0
          %v597 = vadd.f32 0.0, %v596
          %v598 = vpop.f32.mrf.mxu0
          %599 = vdwg.mxu0
          %v600 = vsel %vm471, %v592, 0.0
          %v601 = vsel %vm471, %v597, 0.0
          %v602 = vadd.f32 %v600, %v601
          %v603 = vrot.slane %v602, 4
          %v604 = vadd.f32 %v602, %v603
          %v605 = vrot.slane %v604, 2
          %v606 = vadd.f32 %v604, %v605
          %v607 = vrot.slane %v606, 1
          %v608 = vadd.f32 %v606, %v607
          %609 = vst.msk [vmem:[#allocation9] sm:$0x1] %vm481, %v608
          %610 = vmatprep.subr.mxu0 0.0
          %611 = vmatpush1.msra.mxu0 1.0
          %612 = vmatprep.subr.mxu0 0.0
          %613 = vmatpush1.msra.mxu0 1.0
          %614 = vmatprep.subr.mxu0 0.0
          %615 = vmatpush1.msra.mxu0 1.0
          %616 = vmatprep.subr.mxu0 0.0
          %617 = vmatpush1.msra.mxu0 1.0
          %618 = vmatprep.subr.mxu0 0.0
          %619 = vmatpush1.msra.mxu0 1.0
          %620 = vmatprep.subr.mxu0 0.0
          %621 = vmatpush1.msra.mxu0 1.0
          %622 = vmatprep.subr.mxu0 0.0
          %623 = vmatpush1.msra.mxu0 1.0
          %624 = vmatprep.subr.mxu0 0.0
          %625 = vmatpush1.msra.mxu0 1.0
          %626 = vmatprep.subr.mxu0 0.0
          %627 = vmatpush1.msra.mxu0 1.0
          %628 = vmatprep.subr.mxu0 0.0
          %629 = vmatpush1.msra.mxu0 1.0
          %630 = vmatprep.subr.mxu0 0.0
          %631 = vmatpush1.msra.mxu0 1.0
          %632 = vmatprep.subr.mxu0 0.0
          %633 = vmatpush1.msra.mxu0 1.0
          %634 = vmatprep.subr.mxu0 0.0
          %635 = vmatpush1.msra.mxu0 1.0
          %636 = vmatprep.subr.mxu0 0.0
          %637 = vmatpush1.msra.mxu0 1.0
          %638 = vmatprep.subr.mxu0 0.0
          %639 = vmatpush1.msra.mxu0 1.0
          %640 = vmatprep.subr.mxu0 0.0
          %641 = vmatpush1.msra.mxu0 1.0
          %642 = vmatprep.subr.mxu0 0.0
          %643 = vmatpush2.msra.mxu0 0.0
          %644 = vmatprep.subr.mxu0 0.0
          %645 = vmatpush2.msra.mxu0 0.0
          %646 = vmatprep.subr.mxu0 0.0
          %647 = vmatpush2.msra.mxu0 0.0
          %648 = vmatprep.subr.mxu0 0.0
          %649 = vmatpush2.msra.mxu0 0.0
          %650 = vmatprep.subr.mxu0 0.0
          %651 = vmatpush2.msra.mxu0 0.0
          %652 = vmatprep.subr.mxu0 0.0
          %653 = vmatpush2.msra.mxu0 0.0
          %654 = vmatprep.subr.mxu0 0.0
          %655 = vmatpush2.msra.mxu0 0.0
          %656 = vmatprep.subr.mxu0 0.0
          %657 = vmatpush2.msra.mxu0 0.0
          %658 = vmatprep.subr.mxu0 0.0
          %659 = vmatpush2.msra.mxu0 0.0
          %660 = vmatprep.subr.mxu0 0.0
          %661 = vmatpush2.msra.mxu0 0.0
          %662 = vmatprep.subr.mxu0 0.0
          %663 = vmatpush2.msra.mxu0 0.0
          %664 = vmatprep.subr.mxu0 0.0
          %665 = vmatpush2.msra.mxu0 0.0
          %666 = vmatprep.subr.mxu0 0.0
          %667 = vmatpush2.msra.mxu0 0.0
          %668 = vmatprep.subr.mxu0 0.0
          %669 = vmatpush2.msra.mxu0 0.0
          %670 = vmatprep.subr.mxu0 0.0
          %671 = vmatpush2.msra.mxu0 0.0
          %672 = vmatprep.subr.mxu0 0.0
          %673 = vmatpush2.msra.mxu0 0.0
          %674 = vmatprep.mubr.f32.mxu0 0.0
          %675 = vmatmul.mubr.f32.gmra.mxu0 %v487
          %v676 = vpop.f32.mrf.mxu0
          %v677 = vadd.f32 0.0, %v676
          %v678 = vpop.f32.mrf.mxu0
          %679 = vmatprep.mubr.f32.mxu0 0.0
          %680 = vmatmul.mubr.f32.gmra.mxu0 %v488
          %v681 = vpop.f32.mrf.mxu0
          %v682 = vadd.f32 0.0, %v681
          %v683 = vpop.f32.mrf.mxu0
          %684 = vdwg.mxu0
          %v685 = vsel %vm471, %v677, 0.0
          %v686 = vsel %vm471, %v682, 0.0
          %v687 = vadd.f32 %v685, %v686
          %v688 = vrot.slane %v687, 4
          %v689 = vadd.f32 %v687, %v688
          %v690 = vrot.slane %v689, 2
          %v691 = vadd.f32 %v689, %v690
          %v692 = vrot.slane %v691, 1
          %v693 = vadd.f32 %v691, %v692
          %694 = vst.msk [vmem:[#allocation10] sm:$0x1] %vm481, %v693
          %695 = vst.msk [vmem:[#allocation5] sm:$0x1] %vm481, 0.0
          %696 = vst.msk [vmem:[#allocation6] sm:$0x1] %vm481, 0.0
          %697 = vst.msk [vmem:[#allocation7] sm:$0x1] %vm481, 0.0
        $region48: #{mots_seg_cls_loss.1} parent=31 // pred_fallthru
          _
        %v698 = vld [vmem:[%s268] sm:$0xff]
        %v699 = vld [vmem:[%s268 + $0x8] sm:$0xff]
        %s700 = scalar_lea.vmem %s259, 32 [#allocation13]
        %v701 = vld [vmem:[%s700] sm:$0xff]
        %v702 = vld [vmem:[%s700 + $0x8] sm:$0xff]
        %s703 = scalar_lea.vmem %s259, 48 [#allocation13]
        %v704 = vld [vmem:[%s703] sm:$0xff]
        %v705 = vld [vmem:[%s703 + $0x8] sm:$0xff]
        %v706 = vld [vmem:[#allocation2] sm:$0xff]
        %v707 = vld [vmem:[#allocation2 + $0x8] sm:$0xff]
        %v708 = vld [vmem:[#allocation3] sm:$0xff]
        %v709 = vld [vmem:[#allocation3 + $0x8] sm:$0xff]
        %v710 = vld [vmem:[#allocation4] sm:$0xff]
        %v711 = vld [vmem:[#allocation4 + $0x8] sm:$0xff]
        %v712 = vlaneseq
        %v713 = vshrl.u32 %v712, 7
        %v714 = vadd.s32 %v713, 8
        %v715 = vcvt.s32.f32 %v713
        %v716 = vcvt.s32.f32 %v714
        %v717 = vmul.f32 %v715, 0.0009775171
        %v718 = vmul.f32 %v716, 0.0009775171
        %v719 = vlaneseq
        %v720 = vand.u32 %v719, 127
        %v721 = vadd.s32 %v713, 16
        %v722 = vadd.s32 %v713, 24
        %v723 = vadd.s32 %v713, 32
        %v724 = vadd.s32 %v713, 40
        %v725 = vadd.s32 %v713, 48
        %v726 = vadd.s32 %v713, 56
        %v727 = vadd.s32 %v713, 64
        %v728 = vadd.s32 %v713, 72
        %v729 = vadd.s32 %v713, 80
        %v730 = vadd.s32 %v713, 88
        %v731 = vadd.s32 %v713, 96
        %v732 = vadd.s32 %v713, 104
        %v733 = vadd.s32 %v713, 112
        %v734 = vadd.s32 %v713, 120
        %v735 = vcvt.s32.f32 %v721
        %v736 = vcvt.s32.f32 %v722
        %v737 = vcvt.s32.f32 %v723
        %v738 = vcvt.s32.f32 %v724
        %v739 = vcvt.s32.f32 %v725
        %v740 = vcvt.s32.f32 %v726
        %v741 = vcvt.s32.f32 %v727
        %v742 = vcvt.s32.f32 %v728
        %v743 = vcvt.s32.f32 %v729
        %v744 = vcvt.s32.f32 %v730
        %v745 = vcvt.s32.f32 %v731
        %v746 = vcvt.s32.f32 %v732
        %v747 = vcvt.s32.f32 %v733
        %v748 = vcvt.s32.f32 %v734
        %vm749 = vcmp.eq.s32.totalorder %v720, 0
        %v750 = vmul.f32 %v715, 0.0009770396
        %v751 = vmul.f32 %v716, 0.0009770396
        %v752 = vmul.f32 %v735, 0.0009770396
        %v753 = vmul.f32 %v736, 0.0009770396
        %v754 = vmul.f32 %v737, 0.0009770396
        %v755 = vmul.f32 %v738, 0.0009770396
        %v756 = vmul.f32 %v739, 0.0009770396
        %v757 = vmul.f32 %v740, 0.0009770396
        %v758 = vmul.f32 %v741, 0.0009770396
        %v759 = vmul.f32 %v742, 0.0009770396
        %v760 = vmul.f32 %v743, 0.0009770396
        %v761 = vmul.f32 %v744, 0.0009770396
        %v762 = vmul.f32 %v745, 0.0009770396
        %v763 = vmul.f32 %v746, 0.0009770396
        %v764 = vmul.f32 %v747, 0.0009770396
        %v765 = vmul.f32 %v748, 0.0009770396
        %v766 = vsel %vm749, 1.0, %v750
        %v767 = vsel %vm749, 1.0, %v751
        %v768 = vsel %vm749, 1.0, %v752
        %v769 = vsel %vm749, 1.0, %v753
        %v770 = vsel %vm749, 1.0, %v754
        %v771 = vsel %vm749, 1.0, %v755
        %v772 = vsel %vm749, 1.0, %v756
        %v773 = vsel %vm749, 1.0, %v757
        %v774 = vsel %vm749, 1.0, %v758
        %v775 = vsel %vm749, 1.0, %v759
        %v776 = vsel %vm749, 1.0, %v760
        %v777 = vsel %vm749, 1.0, %v761
        %v778 = vsel %vm749, 1.0, %v762
        %v779 = vsel %vm749, 1.0, %v763
        %v780 = vsel %vm749, 1.0, %v764
        %v781 = vsel %vm749, 1.0, %v765
        %s782 = smul.u32 %s32, 2
        %s783 = sshra.s32 %s782, 7
        %s784 = sand.u32 %s782, 127
        %s785 = sadd.s32 %s783, %s31
        %s786 = smul.u32 %s785, 128
        %s787 = sshra.s32 %s782, 7
        %s788 = sand.u32 %s782, 127
        %s789 = sadd.s32 %s786, %s788
        %s790 = sld [smem:[#allocation12 + %s789]]
        %p791 = scmp.ne.s32.totalorder %s790, 0
        // Predicated region
        $region49: #{mots_seg_cls_loss.1} parent=31 // pred_check
          %p792 = pneg %p791
        $region50: #{mots_seg_cls_loss.1} parent=31 // pred_check_branch
          %794 = sbr.rel (%p792) target = $region52
        $region51: #{mots_seg_cls_loss.1} parent=31 // pred_region
          %v795 = vstv %s790
          %vm796 = vcmp.eq.s32.totalorder %v698, %v795
          %vm797 = vcmp.eq.s32.totalorder %v699, %v795
          %v798 = vsel %vm796, 1, 0
          %v799 = vsel %vm797, 1, 0
          %v800 = vcvt.s32.f32 %v798
          %v801 = vcvt.s32.f32 %v799
          %v802 = vmul.f32 %v800, %v701
          %v803 = vmul.f32 %v801, %v702
          %v804 = vmul.f32 %v800, %v704
          %v805 = vmul.f32 %v801, %v705
          %806 = vmatprep.subr.mxu0 0.0
          %807 = vmatpush1.msra.mxu0 %v781
          %808 = vmatprep.subr.mxu0 0.0
          %809 = vmatpush1.msra.mxu0 %v780
          %810 = vmatprep.subr.mxu0 0.0
          %811 = vmatpush1.msra.mxu0 %v779
          %812 = vmatprep.subr.mxu0 0.0
          %813 = vmatpush1.msra.mxu0 %v778
          %814 = vmatprep.subr.mxu0 0.0
          %815 = vmatpush1.msra.mxu0 %v777
          %816 = vmatprep.subr.mxu0 0.0
          %817 = vmatpush1.msra.mxu0 %v776
          %818 = vmatprep.subr.mxu0 0.0
          %819 = vmatpush1.msra.mxu0 %v775
          %820 = vmatprep.subr.mxu0 0.0
          %821 = vmatpush1.msra.mxu0 %v774
          %822 = vmatprep.subr.mxu0 0.0
          %823 = vmatpush1.msra.mxu0 %v773
          %824 = vmatprep.subr.mxu0 0.0
          %825 = vmatpush1.msra.mxu0 %v772
          %826 = vmatprep.subr.mxu0 0.0
          %827 = vmatpush1.msra.mxu0 %v771
          %828 = vmatprep.subr.mxu0 0.0
          %829 = vmatpush1.msra.mxu0 %v770
          %830 = vmatprep.subr.mxu0 0.0
          %831 = vmatpush1.msra.mxu0 %v769
          %832 = vmatprep.subr.mxu0 0.0
          %833 = vmatpush1.msra.mxu0 %v768
          %834 = vmatprep.subr.mxu0 0.0
          %835 = vmatpush1.msra.mxu0 %v767
          %836 = vmatprep.subr.mxu0 0.0
          %837 = vmatpush1.msra.mxu0 %v766
          %838 = vmatprep.subr.mxu0 0.0
          %839 = vmatpush2.msra.mxu0 0.0
          %840 = vmatprep.subr.mxu0 0.0
          %841 = vmatpush2.msra.mxu0 0.0
          %842 = vmatprep.subr.mxu0 0.0
          %843 = vmatpush2.msra.mxu0 0.0
          %844 = vmatprep.subr.mxu0 0.0
          %845 = vmatpush2.msra.mxu0 0.0
          %846 = vmatprep.subr.mxu0 0.0
          %847 = vmatpush2.msra.mxu0 0.0
          %848 = vmatprep.subr.mxu0 0.0
          %849 = vmatpush2.msra.mxu0 0.0
          %850 = vmatprep.subr.mxu0 0.0
          %851 = vmatpush2.msra.mxu0 0.0
          %852 = vmatprep.subr.mxu0 0.0
          %853 = vmatpush2.msra.mxu0 0.0
          %854 = vmatprep.subr.mxu0 0.0
          %855 = vmatpush2.msra.mxu0 0.0
          %856 = vmatprep.subr.mxu0 0.0
          %857 = vmatpush2.msra.mxu0 0.0
          %858 = vmatprep.subr.mxu0 0.0
          %859 = vmatpush2.msra.mxu0 0.0
          %860 = vmatprep.subr.mxu0 0.0
          %861 = vmatpush2.msra.mxu0 0.0
          %862 = vmatprep.subr.mxu0 0.0
          %863 = vmatpush2.msra.mxu0 0.0
          %864 = vmatprep.subr.mxu0 0.0
          %865 = vmatpush2.msra.mxu0 0.0
          %866 = vmatprep.subr.mxu0 0.0
          %867 = vmatpush2.msra.mxu0 0.0
          %868 = vmatprep.subr.mxu0 0.0
          %869 = vmatpush2.msra.mxu0 0.0
          %870 = vmatprep.mubr.f32.mxu0 0.0
          %871 = vmatmul.mubr.f32.gmra.mxu0 %v800
          %v872 = vpop.f32.mrf.mxu0
          %v873 = vadd.f32 0.0, %v872
          %v874 = vpop.f32.mrf.mxu0
          %875 = vmatprep.mubr.f32.mxu0 0.0
          %876 = vmatmul.mubr.f32.gmra.mxu0 %v801
          %v877 = vpop.f32.mrf.mxu0
          %v878 = vadd.f32 0.0, %v877
          %v879 = vpop.f32.mrf.mxu0
          %880 = vmatprep.mubr.f32.mxu0 0.0
          %881 = vmatmul.mubr.f32.gmra.mxu0 %v802
          %v882 = vpop.f32.mrf.mxu0
          %v883 = vadd.f32 0.0, %v882
          %v884 = vpop.f32.mrf.mxu0
          %885 = vmatprep.mubr.f32.mxu0 0.0
          %886 = vmatmul.mubr.f32.gmra.mxu0 %v803
          %v887 = vpop.f32.mrf.mxu0
          %v888 = vadd.f32 0.0, %v887
          %v889 = vpop.f32.mrf.mxu0
          %890 = vmatprep.mubr.f32.mxu0 0.0
          %891 = vmatmul.mubr.f32.gmra.mxu0 %v804
          %v892 = vpop.f32.mrf.mxu0
          %v893 = vadd.f32 0.0, %v892
          %v894 = vpop.f32.mrf.mxu0
          %895 = vmatprep.mubr.f32.mxu0 0.0
          %896 = vmatmul.mubr.f32.gmra.mxu0 %v805
          %v897 = vpop.f32.mrf.mxu0
          %v898 = vadd.f32 0.0, %v897
          %v899 = vpop.f32.mrf.mxu0
          %900 = vdwg.mxu0
          %vm901 = vcmask 7168
          %v902 = vsel %vm901, %v873, 0.0
          %v903 = vsel %vm901, %v878, 0.0
          %v904 = vadd.f32 %v902, %v903
          %v905 = vrot.slane %v904, 4
          %v906 = vadd.f32 %v904, %v905
          %v907 = vrot.slane %v906, 2
          %v908 = vadd.f32 %v906, %v907
          %v909 = vrot.slane %v908, 1
          %v910 = vadd.f32 %v908, %v909
          %vm911 = vcmask 15368
          %v912 = vsel %vm911, %v873, 0.0
          %v913 = vsel %vm911, %v878, 0.0
          %v914 = vadd.f32 %v912, %v913
          %v915 = vrot.slane %v914, 4
          %v916 = vadd.f32 %v914, %v915
          %v917 = vrot.slane %v916, 2
          %v918 = vadd.f32 %v916, %v917
          %v919 = vrot.slane %v918, 1
          %v920 = vadd.f32 %v918, %v919
          %v921 = vmul.f32 %v873, %v717
          %v922 = vmul.f32 %v878, %v718
          %v923 = vsel %vm901, %v921, 0.0
          %v924 = vsel %vm901, %v922, 0.0
          %v925 = vadd.f32 %v923, %v924
          %v926 = vrot.slane %v925, 4
          %v927 = vadd.f32 %v925, %v926
          %v928 = vrot.slane %v927, 2
          %v929 = vadd.f32 %v927, %v928
          %v930 = vrot.slane %v929, 1
          %v931 = vadd.f32 %v929, %v930
          %v932 = vsel %vm901, %v883, 0.0
          %v933 = vsel %vm901, %v888, 0.0
          %v934 = vadd.f32 %v932, %v933
          %v935 = vrot.slane %v934, 4
          %v936 = vadd.f32 %v934, %v935
          %v937 = vrot.slane %v936, 2
          %v938 = vadd.f32 %v936, %v937
          %v939 = vrot.slane %v938, 1
          %v940 = vadd.f32 %v938, %v939
          %v941 = vsel %vm901, %v893, 0.0
          %v942 = vsel %vm901, %v898, 0.0
          %v943 = vadd.f32 %v941, %v942
          %v944 = vrot.slane %v943, 4
          %v945 = vadd.f32 %v943, %v944
          %v946 = vrot.slane %v945, 2
          %v947 = vadd.f32 %v945, %v946
          %v948 = vrot.slane %v947, 1
          %v949 = vadd.f32 %v947, %v948
          %v950 = vmax.f32 %v910, 1.0
          %v951 = vrcp.pop %v950
          %953 = vrot.lane.b32.xlu0 %v951, 1
          %v954 = vpop.permute.xlu0 %953
          %v956 = vmul.f32 %v920, %v954
          %v957 = vmul.f32 %v931, %v951
          %v958 = vmul.f32 %v940, %v951
          %v959 = vmul.f32 %v949, %v951
          %v960 = vmul.f32 %v958, 10.0
          %v961 = vmin.f32 %v960, 60.0
          %v962 = vmul.f32 %v961, 1.442695
          %v963 = vpow.pop %v962
          %v964 = vmul.f32 %v959, 10.0
          %v965 = vmin.f32 %v964, 60.0
          %v966 = vmul.f32 %v965, 1.442695
          %v967 = vpow.pop %v966
          %969 = vrot.lane.b32.xlu0 %v956, 127
          %v970 = vpop.permute.xlu0 %969
          %s971 = vtos %v970
          %v972 = vstv %s971
          %v974 = vsub.f32 %v706, %v972
          %v975 = vsub.f32 %v707, %v972
          %977 = vset.pattern.permute.xlu0 0
          %978 = vperm.xlu0 %977, %v957
          %v979 = vpop.permute.xlu0 %978
          %v981 = vsub.f32 %v708, %v979
          %v982 = vsub.f32 %v709, %v979
          %v983 = vmul.f32 %v974, %v974
          %v984 = vmul.f32 %v975, %v975
          %986 = vset.pattern.permute.xlu0 0
          %987 = vperm.xlu0 %986, %v963
          %v988 = vpop.permute.xlu0 %987
          %v990 = vmul.f32 %v983, %v988
          %v991 = vmul.f32 %v984, %v988
          %v992 = vmul.f32 %v981, %v981
          %v993 = vmul.f32 %v982, %v982
          %995 = vset.pattern.permute.xlu0 0
          %996 = vperm.xlu0 %995, %v967
          %v997 = vpop.permute.xlu0 %996
          %v999 = vmul.f32 %v992, %v997
          %v1000 = vmul.f32 %v993, %v997
          %v1001 = vadd.f32 %v990, %v999
          %v1002 = vadd.f32 %v991, %v1000
          %v1003 = vsub.f32 0.0, %v1001
          %v1004 = vsub.f32 0.0, %v1002
          %v1005 = vmul.f32 %v1003, 1.442695
          %v1006 = vpow.pop %v1005
          %v1007 = vmul.f32 %v1004, 1.442695
          %v1008 = vpow.pop %v1007
          %1010 = vset.pattern.permute.xlu0 0
          %1011 = vperm.xlu0 %1010, %v958
          %v1012 = vpop.permute.xlu0 %1011
          %v1014 = vsub.f32 %v701, %v1012
          %v1015 = vsub.f32 %v702, %v1012
          %1017 = vset.pattern.permute.xlu0 0
          %1018 = vperm.xlu0 %1017, %v959
          %v1019 = vpop.permute.xlu0 %1018
          %v1021 = vsub.f32 %v704, %v1019
          %v1022 = vsub.f32 %v705, %v1019
          %v1023 = vsub.f32 %v710, %v1006
          %v1024 = vsub.f32 %v711, %v1008
          %v1025 = vmul.f32 %v1014, %v1014
          %v1026 = vmul.f32 %v1015, %v1015
          %v1027 = vmul.f32 %v1021, %v1021
          %v1028 = vmul.f32 %v1022, %v1022
          %v1029 = vadd.f32 %v1025, %v1027
          %v1030 = vadd.f32 %v1026, %v1028
          %v1031 = vmul.f32 %v800, %v1029
          %v1032 = vmul.f32 %v801, %v1030
          %v1033 = vmul.f32 %v1023, %v1023
          %v1034 = vmul.f32 %v1024, %v1024
          %v1035 = vmul.f32 %v800, %v1033
          %v1036 = vmul.f32 %v801, %v1034
          %1037 = vmatprep.subr.mxu0 0.0
          %1038 = vmatpush1.msra.mxu0 1.0
          %1039 = vmatprep.subr.mxu0 0.0
          %1040 = vmatpush1.msra.mxu0 1.0
          %1041 = vmatprep.subr.mxu0 0.0
          %1042 = vmatpush1.msra.mxu0 1.0
          %1043 = vmatprep.subr.mxu0 0.0
          %1044 = vmatpush1.msra.mxu0 1.0
          %1045 = vmatprep.subr.mxu0 0.0
          %1046 = vmatpush1.msra.mxu0 1.0
          %1047 = vmatprep.subr.mxu0 0.0
          %1048 = vmatpush1.msra.mxu0 1.0
          %1049 = vmatprep.subr.mxu0 0.0
          %1050 = vmatpush1.msra.mxu0 1.0
          %1051 = vmatprep.subr.mxu0 0.0
          %1052 = vmatpush1.msra.mxu0 1.0
          %1053 = vmatprep.subr.mxu0 0.0
          %1054 = vmatpush1.msra.mxu0 1.0
          %1055 = vmatprep.subr.mxu0 0.0
          %1056 = vmatpush1.msra.mxu0 1.0
          %1057 = vmatprep.subr.mxu0 0.0
          %1058 = vmatpush1.msra.mxu0 1.0
          %1059 = vmatprep.subr.mxu0 0.0
          %1060 = vmatpush1.msra.mxu0 1.0
          %1061 = vmatprep.subr.mxu0 0.0
          %1062 = vmatpush1.msra.mxu0 1.0
          %1063 = vmatprep.subr.mxu0 0.0
          %1064 = vmatpush1.msra.mxu0 1.0
          %1065 = vmatprep.subr.mxu0 0.0
          %1066 = vmatpush1.msra.mxu0 1.0
          %1067 = vmatprep.subr.mxu0 0.0
          %1068 = vmatpush1.msra.mxu0 1.0
          %1069 = vmatprep.subr.mxu0 0.0
          %1070 = vmatpush2.msra.mxu0 0.0
          %1071 = vmatprep.subr.mxu0 0.0
          %1072 = vmatpush2.msra.mxu0 0.0
          %1073 = vmatprep.subr.mxu0 0.0
          %1074 = vmatpush2.msra.mxu0 0.0
          %1075 = vmatprep.subr.mxu0 0.0
          %1076 = vmatpush2.msra.mxu0 0.0
          %1077 = vmatprep.subr.mxu0 0.0
          %1078 = vmatpush2.msra.mxu0 0.0
          %1079 = vmatprep.subr.mxu0 0.0
          %1080 = vmatpush2.msra.mxu0 0.0
          %1081 = vmatprep.subr.mxu0 0.0
          %1082 = vmatpush2.msra.mxu0 0.0
          %1083 = vmatprep.subr.mxu0 0.0
          %1084 = vmatpush2.msra.mxu0 0.0
          %1085 = vmatprep.subr.mxu0 0.0
          %1086 = vmatpush2.msra.mxu0 0.0
          %1087 = vmatprep.subr.mxu0 0.0
          %1088 = vmatpush2.msra.mxu0 0.0
          %1089 = vmatprep.subr.mxu0 0.0
          %1090 = vmatpush2.msra.mxu0 0.0
          %1091 = vmatprep.subr.mxu0 0.0
          %1092 = vmatpush2.msra.mxu0 0.0
          %1093 = vmatprep.subr.mxu0 0.0
          %1094 = vmatpush2.msra.mxu0 0.0
          %1095 = vmatprep.subr.mxu0 0.0
          %1096 = vmatpush2.msra.mxu0 0.0
          %1097 = vmatprep.subr.mxu0 0.0
          %1098 = vmatpush2.msra.mxu0 0.0
          %1099 = vmatprep.subr.mxu0 0.0
          %1100 = vmatpush2.msra.mxu0 0.0
          %1101 = vmatprep.mubr.f32.mxu0 0.0
          %1102 = vmatmul.mubr.f32.gmra.mxu0 %v1031
          %v1103 = vpop.f32.mrf.mxu0
          %v1104 = vadd.f32 0.0, %v1103
          %v1105 = vpop.f32.mrf.mxu0
          %1106 = vmatprep.mubr.f32.mxu0 0.0
          %1107 = vmatmul.mubr.f32.gmra.mxu0 %v1032
          %v1108 = vpop.f32.mrf.mxu0
          %v1109 = vadd.f32 0.0, %v1108
          %v1110 = vpop.f32.mrf.mxu0
          %1111 = vmatprep.mubr.f32.mxu0 0.0
          %1112 = vmatmul.mubr.f32.gmra.mxu0 %v1035
          %v1113 = vpop.f32.mrf.mxu0
          %v1114 = vadd.f32 0.0, %v1113
          %v1115 = vpop.f32.mrf.mxu0
          %1116 = vmatprep.mubr.f32.mxu0 0.0
          %1117 = vmatmul.mubr.f32.gmra.mxu0 %v1036
          %v1118 = vpop.f32.mrf.mxu0
          %v1119 = vadd.f32 0.0, %v1118
          %v1120 = vpop.f32.mrf.mxu0
          %1121 = vdwg.mxu0
          %v1122 = vsel %vm901, %v1104, 0.0
          %v1123 = vsel %vm901, %v1109, 0.0
          %v1124 = vadd.f32 %v1122, %v1123
          %v1125 = vrot.slane %v1124, 4
          %v1126 = vadd.f32 %v1124, %v1125
          %v1127 = vrot.slane %v1126, 2
          %v1128 = vadd.f32 %v1126, %v1127
          %v1129 = vrot.slane %v1128, 1
          %v1130 = vadd.f32 %v1128, %v1129
          %v1131 = vsel %vm901, %v1114, 0.0
          %v1132 = vsel %vm901, %v1119, 0.0
          %v1133 = vadd.f32 %v1131, %v1132
          %v1134 = vrot.slane %v1133, 4
          %v1135 = vadd.f32 %v1133, %v1134
          %v1136 = vrot.slane %v1135, 2
          %v1137 = vadd.f32 %v1135, %v1136
          %v1138 = vrot.slane %v1137, 1
          %v1139 = vadd.f32 %v1137, %v1138
          %v1140 = vld [vmem:[#allocation5] sm:$0x1]
          %v1141 = vrcp.pop 2.0
          %v1142 = vmul.f32 %v951, %v1141
          %v1143 = vmul.f32 %v1130, %v1142
          %v1144 = vadd.f32 %v1140, %v1143
          %vm1145 = vcmask 0
          %1146 = vst.msk [vmem:[#allocation5] sm:$0x1] %vm1145, %v1144
          %v1147 = vld [vmem:[#allocation6] sm:$0x1]
          %v1148 = vadd.f32 %v1147, %v1139
          %1149 = vst.msk [vmem:[#allocation6] sm:$0x1] %vm1145, %v1148
          %v1150 = vld [vmem:[#allocation7] sm:$0x1]
          %v1151 = vadd.f32 %v1150, 1.0
          %1152 = vst.msk [vmem:[#allocation7] sm:$0x1] %vm1145, %v1151
          %v1153 = vpack.c.bf16 %v1008, %v1006
          %v1155 = vunpack.c.l.b16 %v1153
          %v1156 = vunpack.c.h.b16 %v1153
          %v1157 = vpack.c.b16 %v1155, %v1155
          %v1158 = vpack.c.b16 %v1156, %v1156
          %1161 = vst [vmem:[%s334] sm:$0xf] %v1157
          %1162 = vst [vmem:[%s334 + $0x4] sm:$0xf] %v1158
        $region52: #{mots_seg_cls_loss.1} parent=31 // pred_fallthru
          _
        %p1163 = scmp.eq.s32.totalorder %s790, 0
        // Predicated region
        $region53: #{mots_seg_cls_loss.1} parent=31 // pred_check
          %p1164 = pneg %p1163
        $region54: #{mots_seg_cls_loss.1} parent=31 // pred_check_branch
          %1166 = sbr.rel (%p1164) target = $region56
        $region55: #{mots_seg_cls_loss.1} parent=31 // pred_region
          %1167 = vst [vmem:[%s334] sm:$0xf] 0
          %1168 = vst [vmem:[%s334 + $0x4] sm:$0xf] 0
        $region56: #{mots_seg_cls_loss.1} parent=31 // pred_fallthru
          _
        %s1169 = sadd.s32 %s782, 1
        %s1170 = sshra.s32 %s1169, 7
        %s1171 = sand.u32 %s1169, 127
        %s1172 = sadd.s32 %s1170, %s31
        %s1173 = smul.u32 %s1172, 128
        %s1174 = sshra.s32 %s1169, 7
        %s1175 = sand.u32 %s1169, 127
        %s1176 = sadd.s32 %s1173, %s1175
        %s1177 = sld [smem:[#allocation12 + %s1176]]
        %p1178 = scmp.ne.s32.totalorder %s1177, 0
        // Predicated region
        $region57: #{mots_seg_cls_loss.1} parent=31 // pred_check
          %p1179 = pneg %p1178
        $region58: #{mots_seg_cls_loss.1} parent=31 // pred_check_branch
          %1181 = sbr.rel (%p1179) target = $region60
        $region59: #{mots_seg_cls_loss.1} parent=31 // pred_region
          %v1182 = vstv %s1177
          %vm1183 = vcmp.eq.s32.totalorder %v698, %v1182
          %vm1184 = vcmp.eq.s32.totalorder %v699, %v1182
          %v1185 = vsel %vm1183, 1, 0
          %v1186 = vsel %vm1184, 1, 0
          %v1187 = vcvt.s32.f32 %v1185
          %v1188 = vcvt.s32.f32 %v1186
          %v1189 = vmul.f32 %v1187, %v701
          %v1190 = vmul.f32 %v1188, %v702
          %v1191 = vmul.f32 %v1187, %v704
          %v1192 = vmul.f32 %v1188, %v705
          %1193 = vmatprep.subr.mxu0 0.0
          %1194 = vmatpush1.msra.mxu0 %v781
          %1195 = vmatprep.subr.mxu0 0.0
          %1196 = vmatpush1.msra.mxu0 %v780
          %1197 = vmatprep.subr.mxu0 0.0
          %1198 = vmatpush1.msra.mxu0 %v779
          %1199 = vmatprep.subr.mxu0 0.0
          %1200 = vmatpush1.msra.mxu0 %v778
          %1201 = vmatprep.subr.mxu0 0.0
          %1202 = vmatpush1.msra.mxu0 %v777
          %1203 = vmatprep.subr.mxu0 0.0
          %1204 = vmatpush1.msra.mxu0 %v776
          %1205 = vmatprep.subr.mxu0 0.0
          %1206 = vmatpush1.msra.mxu0 %v775
          %1207 = vmatprep.subr.mxu0 0.0
          %1208 = vmatpush1.msra.mxu0 %v774
          %1209 = vmatprep.subr.mxu0 0.0
          %1210 = vmatpush1.msra.mxu0 %v773
          %1211 = vmatprep.subr.mxu0 0.0
          %1212 = vmatpush1.msra.mxu0 %v772
          %1213 = vmatprep.subr.mxu0 0.0
          %1214 = vmatpush1.msra.mxu0 %v771
          %1215 = vmatprep.subr.mxu0 0.0
          %1216 = vmatpush1.msra.mxu0 %v770
          %1217 = vmatprep.subr.mxu0 0.0
          %1218 = vmatpush1.msra.mxu0 %v769
          %1219 = vmatprep.subr.mxu0 0.0
          %1220 = vmatpush1.msra.mxu0 %v768
          %1221 = vmatprep.subr.mxu0 0.0
          %1222 = vmatpush1.msra.mxu0 %v767
          %1223 = vmatprep.subr.mxu0 0.0
          %1224 = vmatpush1.msra.mxu0 %v766
          %1225 = vmatprep.subr.mxu0 0.0
          %1226 = vmatpush2.msra.mxu0 0.0
          %1227 = vmatprep.subr.mxu0 0.0
          %1228 = vmatpush2.msra.mxu0 0.0
          %1229 = vmatprep.subr.mxu0 0.0
          %1230 = vmatpush2.msra.mxu0 0.0
          %1231 = vmatprep.subr.mxu0 0.0
          %1232 = vmatpush2.msra.mxu0 0.0
          %1233 = vmatprep.subr.mxu0 0.0
          %1234 = vmatpush2.msra.mxu0 0.0
          %1235 = vmatprep.subr.mxu0 0.0
          %1236 = vmatpush2.msra.mxu0 0.0
          %1237 = vmatprep.subr.mxu0 0.0
          %1238 = vmatpush2.msra.mxu0 0.0
          %1239 = vmatprep.subr.mxu0 0.0
          %1240 = vmatpush2.msra.mxu0 0.0
          %1241 = vmatprep.subr.mxu0 0.0
          %1242 = vmatpush2.msra.mxu0 0.0
          %1243 = vmatprep.subr.mxu0 0.0
          %1244 = vmatpush2.msra.mxu0 0.0
          %1245 = vmatprep.subr.mxu0 0.0
          %1246 = vmatpush2.msra.mxu0 0.0
          %1247 = vmatprep.subr.mxu0 0.0
          %1248 = vmatpush2.msra.mxu0 0.0
          %1249 = vmatprep.subr.mxu0 0.0
          %1250 = vmatpush2.msra.mxu0 0.0
          %1251 = vmatprep.subr.mxu0 0.0
          %1252 = vmatpush2.msra.mxu0 0.0
          %1253 = vmatprep.subr.mxu0 0.0
          %1254 = vmatpush2.msra.mxu0 0.0
          %1255 = vmatprep.subr.mxu0 0.0
          %1256 = vmatpush2.msra.mxu0 0.0
          %1257 = vmatprep.mubr.f32.mxu0 0.0
          %1258 = vmatmul.mubr.f32.gmra.mxu0 %v1187
          %v1259 = vpop.f32.mrf.mxu0
          %v1260 = vadd.f32 0.0, %v1259
          %v1261 = vpop.f32.mrf.mxu0
          %1262 = vmatprep.mubr.f32.mxu0 0.0
          %1263 = vmatmul.mubr.f32.gmra.mxu0 %v1188
          %v1264 = vpop.f32.mrf.mxu0
          %v1265 = vadd.f32 0.0, %v1264
          %v1266 = vpop.f32.mrf.mxu0
          %1267 = vmatprep.mubr.f32.mxu0 0.0
          %1268 = vmatmul.mubr.f32.gmra.mxu0 %v1189
          %v1269 = vpop.f32.mrf.mxu0
          %v1270 = vadd.f32 0.0, %v1269
          %v1271 = vpop.f32.mrf.mxu0
          %1272 = vmatprep.mubr.f32.mxu0 0.0
          %1273 = vmatmul.mubr.f32.gmra.mxu0 %v1190
          %v1274 = vpop.f32.mrf.mxu0
          %v1275 = vadd.f32 0.0, %v1274
          %v1276 = vpop.f32.mrf.mxu0
          %1277 = vmatprep.mubr.f32.mxu0 0.0
          %1278 = vmatmul.mubr.f32.gmra.mxu0 %v1191
          %v1279 = vpop.f32.mrf.mxu0
          %v1280 = vadd.f32 0.0, %v1279
          %v1281 = vpop.f32.mrf.mxu0
          %1282 = vmatprep.mubr.f32.mxu0 0.0
          %1283 = vmatmul.mubr.f32.gmra.mxu0 %v1192
          %v1284 = vpop.f32.mrf.mxu0
          %v1285 = vadd.f32 0.0, %v1284
          %v1286 = vpop.f32.mrf.mxu0
          %1287 = vdwg.mxu0
          %vm1288 = vcmask 7168
          %v1289 = vsel %vm1288, %v1260, 0.0
          %v1290 = vsel %vm1288, %v1265, 0.0
          %v1291 = vadd.f32 %v1289, %v1290
          %v1292 = vrot.slane %v1291, 4
          %v1293 = vadd.f32 %v1291, %v1292
          %v1294 = vrot.slane %v1293, 2
          %v1295 = vadd.f32 %v1293, %v1294
          %v1296 = vrot.slane %v1295, 1
          %v1297 = vadd.f32 %v1295, %v1296
          %vm1298 = vcmask 15368
          %v1299 = vsel %vm1298, %v1260, 0.0
          %v1300 = vsel %vm1298, %v1265, 0.0
          %v1301 = vadd.f32 %v1299, %v1300
          %v1302 = vrot.slane %v1301, 4
          %v1303 = vadd.f32 %v1301, %v1302
          %v1304 = vrot.slane %v1303, 2
          %v1305 = vadd.f32 %v1303, %v1304
          %v1306 = vrot.slane %v1305, 1
          %v1307 = vadd.f32 %v1305, %v1306
          %v1308 = vmul.f32 %v1260, %v717
          %v1309 = vmul.f32 %v1265, %v718
          %v1310 = vsel %vm1288, %v1308, 0.0
          %v1311 = vsel %vm1288, %v1309, 0.0
          %v1312 = vadd.f32 %v1310, %v1311
          %v1313 = vrot.slane %v1312, 4
          %v1314 = vadd.f32 %v1312, %v1313
          %v1315 = vrot.slane %v1314, 2
          %v1316 = vadd.f32 %v1314, %v1315
          %v1317 = vrot.slane %v1316, 1
          %v1318 = vadd.f32 %v1316, %v1317
          %v1319 = vsel %vm1288, %v1270, 0.0
          %v1320 = vsel %vm1288, %v1275, 0.0
          %v1321 = vadd.f32 %v1319, %v1320
          %v1322 = vrot.slane %v1321, 4
          %v1323 = vadd.f32 %v1321, %v1322
          %v1324 = vrot.slane %v1323, 2
          %v1325 = vadd.f32 %v1323, %v1324
          %v1326 = vrot.slane %v1325, 1
          %v1327 = vadd.f32 %v1325, %v1326
          %v1328 = vsel %vm1288, %v1280, 0.0
          %v1329 = vsel %vm1288, %v1285, 0.0
          %v1330 = vadd.f32 %v1328, %v1329
          %v1331 = vrot.slane %v1330, 4
          %v1332 = vadd.f32 %v1330, %v1331
          %v1333 = vrot.slane %v1332, 2
          %v1334 = vadd.f32 %v1332, %v1333
          %v1335 = vrot.slane %v1334, 1
          %v1336 = vadd.f32 %v1334, %v1335
          %v1337 = vmax.f32 %v1297, 1.0
          %v1338 = vrcp.pop %v1337
          %1340 = vrot.lane.b32.xlu0 %v1338, 1
          %v1341 = vpop.permute.xlu0 %1340
          %v1343 = vmul.f32 %v1307, %v1341
          %v1344 = vmul.f32 %v1318, %v1338
          %v1345 = vmul.f32 %v1327, %v1338
          %v1346 = vmul.f32 %v1336, %v1338
          %v1347 = vmul.f32 %v1345, 10.0
          %v1348 = vmin.f32 %v1347, 60.0
          %v1349 = vmul.f32 %v1348, 1.442695
          %v1350 = vpow.pop %v1349
          %v1351 = vmul.f32 %v1346, 10.0
          %v1352 = vmin.f32 %v1351, 60.0
          %v1353 = vmul.f32 %v1352, 1.442695
          %v1354 = vpow.pop %v1353
          %1356 = vrot.lane.b32.xlu0 %v1343, 127
          %v1357 = vpop.permute.xlu0 %1356
          %s1358 = vtos %v1357
          %v1359 = vstv %s1358
          %v1361 = vsub.f32 %v706, %v1359
          %v1362 = vsub.f32 %v707, %v1359
          %1364 = vset.pattern.permute.xlu0 0
          %1365 = vperm.xlu0 %1364, %v1344
          %v1366 = vpop.permute.xlu0 %1365
          %v1368 = vsub.f32 %v708, %v1366
          %v1369 = vsub.f32 %v709, %v1366
          %v1370 = vmul.f32 %v1361, %v1361
          %v1371 = vmul.f32 %v1362, %v1362
          %1373 = vset.pattern.permute.xlu0 0
          %1374 = vperm.xlu0 %1373, %v1350
          %v1375 = vpop.permute.xlu0 %1374
          %v1377 = vmul.f32 %v1370, %v1375
          %v1378 = vmul.f32 %v1371, %v1375
          %v1379 = vmul.f32 %v1368, %v1368
          %v1380 = vmul.f32 %v1369, %v1369
          %1382 = vset.pattern.permute.xlu0 0
          %1383 = vperm.xlu0 %1382, %v1354
          %v1384 = vpop.permute.xlu0 %1383
          %v1386 = vmul.f32 %v1379, %v1384
          %v1387 = vmul.f32 %v1380, %v1384
          %v1388 = vadd.f32 %v1377, %v1386
          %v1389 = vadd.f32 %v1378, %v1387
          %v1390 = vsub.f32 0.0, %v1388
          %v1391 = vsub.f32 0.0, %v1389
          %v1392 = vmul.f32 %v1390, 1.442695
          %v1393 = vpow.pop %v1392
          %v1394 = vmul.f32 %v1391, 1.442695
          %v1395 = vpow.pop %v1394
          %1397 = vset.pattern.permute.xlu0 0
          %1398 = vperm.xlu0 %1397, %v1345
          %v1399 = vpop.permute.xlu0 %1398
          %v1401 = vsub.f32 %v701, %v1399
          %v1402 = vsub.f32 %v702, %v1399
          %1404 = vset.pattern.permute.xlu0 0
          %1405 = vperm.xlu0 %1404, %v1346
          %v1406 = vpop.permute.xlu0 %1405
          %v1408 = vsub.f32 %v704, %v1406
          %v1409 = vsub.f32 %v705, %v1406
          %v1410 = vsub.f32 %v710, %v1393
          %v1411 = vsub.f32 %v711, %v1395
          %v1412 = vmul.f32 %v1401, %v1401
          %v1413 = vmul.f32 %v1402, %v1402
          %v1414 = vmul.f32 %v1408, %v1408
          %v1415 = vmul.f32 %v1409, %v1409
          %v1416 = vadd.f32 %v1412, %v1414
          %v1417 = vadd.f32 %v1413, %v1415
          %v1418 = vmul.f32 %v1187, %v1416
          %v1419 = vmul.f32 %v1188, %v1417
          %v1420 = vmul.f32 %v1410, %v1410
          %v1421 = vmul.f32 %v1411, %v1411
          %v1422 = vmul.f32 %v1187, %v1420
          %v1423 = vmul.f32 %v1188, %v1421
          %1424 = vmatprep.subr.mxu0 0.0
          %1425 = vmatpush1.msra.mxu0 1.0
          %1426 = vmatprep.subr.mxu0 0.0
          %1427 = vmatpush1.msra.mxu0 1.0
          %1428 = vmatprep.subr.mxu0 0.0
          %1429 = vmatpush1.msra.mxu0 1.0
          %1430 = vmatprep.subr.mxu0 0.0
          %1431 = vmatpush1.msra.mxu0 1.0
          %1432 = vmatprep.subr.mxu0 0.0
          %1433 = vmatpush1.msra.mxu0 1.0
          %1434 = vmatprep.subr.mxu0 0.0
          %1435 = vmatpush1.msra.mxu0 1.0
          %1436 = vmatprep.subr.mxu0 0.0
          %1437 = vmatpush1.msra.mxu0 1.0
          %1438 = vmatprep.subr.mxu0 0.0
          %1439 = vmatpush1.msra.mxu0 1.0
          %1440 = vmatprep.subr.mxu0 0.0
          %1441 = vmatpush1.msra.mxu0 1.0
          %1442 = vmatprep.subr.mxu0 0.0
          %1443 = vmatpush1.msra.mxu0 1.0
          %1444 = vmatprep.subr.mxu0 0.0
          %1445 = vmatpush1.msra.mxu0 1.0
          %1446 = vmatprep.subr.mxu0 0.0
          %1447 = vmatpush1.msra.mxu0 1.0
          %1448 = vmatprep.subr.mxu0 0.0
          %1449 = vmatpush1.msra.mxu0 1.0
          %1450 = vmatprep.subr.mxu0 0.0
          %1451 = vmatpush1.msra.mxu0 1.0
          %1452 = vmatprep.subr.mxu0 0.0
          %1453 = vmatpush1.msra.mxu0 1.0
          %1454 = vmatprep.subr.mxu0 0.0
          %1455 = vmatpush1.msra.mxu0 1.0
          %1456 = vmatprep.subr.mxu0 0.0
          %1457 = vmatpush2.msra.mxu0 0.0
          %1458 = vmatprep.subr.mxu0 0.0
          %1459 = vmatpush2.msra.mxu0 0.0
          %1460 = vmatprep.subr.mxu0 0.0
          %1461 = vmatpush2.msra.mxu0 0.0
          %1462 = vmatprep.subr.mxu0 0.0
          %1463 = vmatpush2.msra.mxu0 0.0
          %1464 = vmatprep.subr.mxu0 0.0
          %1465 = vmatpush2.msra.mxu0 0.0
          %1466 = vmatprep.subr.mxu0 0.0
          %1467 = vmatpush2.msra.mxu0 0.0
          %1468 = vmatprep.subr.mxu0 0.0
          %1469 = vmatpush2.msra.mxu0 0.0
          %1470 = vmatprep.subr.mxu0 0.0
          %1471 = vmatpush2.msra.mxu0 0.0
          %1472 = vmatprep.subr.mxu0 0.0
          %1473 = vmatpush2.msra.mxu0 0.0
          %1474 = vmatprep.subr.mxu0 0.0
          %1475 = vmatpush2.msra.mxu0 0.0
          %1476 = vmatprep.subr.mxu0 0.0
          %1477 = vmatpush2.msra.mxu0 0.0
          %1478 = vmatprep.subr.mxu0 0.0
          %1479 = vmatpush2.msra.mxu0 0.0
          %1480 = vmatprep.subr.mxu0 0.0
          %1481 = vmatpush2.msra.mxu0 0.0
          %1482 = vmatprep.subr.mxu0 0.0
          %1483 = vmatpush2.msra.mxu0 0.0
          %1484 = vmatprep.subr.mxu0 0.0
          %1485 = vmatpush2.msra.mxu0 0.0
          %1486 = vmatprep.subr.mxu0 0.0
          %1487 = vmatpush2.msra.mxu0 0.0
          %1488 = vmatprep.mubr.f32.mxu0 0.0
          %1489 = vmatmul.mubr.f32.gmra.mxu0 %v1418
          %v1490 = vpop.f32.mrf.mxu0
          %v1491 = vadd.f32 0.0, %v1490
          %v1492 = vpop.f32.mrf.mxu0
          %1493 = vmatprep.mubr.f32.mxu0 0.0
          %1494 = vmatmul.mubr.f32.gmra.mxu0 %v1419
          %v1495 = vpop.f32.mrf.mxu0
          %v1496 = vadd.f32 0.0, %v1495
          %v1497 = vpop.f32.mrf.mxu0
          %1498 = vmatprep.mubr.f32.mxu0 0.0
          %1499 = vmatmul.mubr.f32.gmra.mxu0 %v1422
          %v1500 = vpop.f32.mrf.mxu0
          %v1501 = vadd.f32 0.0, %v1500
          %v1502 = vpop.f32.mrf.mxu0
          %1503 = vmatprep.mubr.f32.mxu0 0.0
          %1504 = vmatmul.mubr.f32.gmra.mxu0 %v1423
          %v1505 = vpop.f32.mrf.mxu0
          %v1506 = vadd.f32 0.0, %v1505
          %v1507 = vpop.f32.mrf.mxu0
          %1508 = vdwg.mxu0
          %v1509 = vsel %vm1288, %v1491, 0.0
          %v1510 = vsel %vm1288, %v1496, 0.0
          %v1511 = vadd.f32 %v1509, %v1510
          %v1512 = vrot.slane %v1511, 4
          %v1513 = vadd.f32 %v1511, %v1512
          %v1514 = vrot.slane %v1513, 2
          %v1515 = vadd.f32 %v1513, %v1514
          %v1516 = vrot.slane %v1515, 1
          %v1517 = vadd.f32 %v1515, %v1516
          %v1518 = vsel %vm1288, %v1501, 0.0
          %v1519 = vsel %vm1288, %v1506, 0.0
          %v1520 = vadd.f32 %v1518, %v1519
          %v1521 = vrot.slane %v1520, 4
          %v1522 = vadd.f32 %v1520, %v1521
          %v1523 = vrot.slane %v1522, 2
          %v1524 = vadd.f32 %v1522, %v1523
          %v1525 = vrot.slane %v1524, 1
          %v1526 = vadd.f32 %v1524, %v1525
          %v1527 = vld [vmem:[#allocation5] sm:$0x1]
          %v1528 = vrcp.pop 2.0
          %v1529 = vmul.f32 %v1338, %v1528
          %v1530 = vmul.f32 %v1517, %v1529
          %v1531 = vadd.f32 %v1527, %v1530
          %vm1532 = vcmask 0
          %1533 = vst.msk [vmem:[#allocation5] sm:$0x1] %vm1532, %v1531
          %v1534 = vld [vmem:[#allocation6] sm:$0x1]
          %v1535 = vadd.f32 %v1534, %v1526
          %1536 = vst.msk [vmem:[#allocation6] sm:$0x1] %vm1532, %v1535
          %v1537 = vld [vmem:[#allocation7] sm:$0x1]
          %v1538 = vadd.f32 %v1537, 1.0
          %1539 = vst.msk [vmem:[#allocation7] sm:$0x1] %vm1532, %v1538
          %v1540 = vpack.c.bf16 %v1395, %v1393
          %v1542 = vunpack.c.l.b16 %v1540
          %v1543 = vunpack.c.h.b16 %v1540
          %v1544 = vpack.c.b16 %v1542, %v1542
          %v1545 = vpack.c.b16 %v1543, %v1543
          %s1548 = scalar_lea.vmem %s334, 8
          %1549 = vst [vmem:[%s1548] sm:$0xf] %v1544
          %1550 = vst [vmem:[%s1548 + $0x4] sm:$0xf] %v1545
        $region60: #{mots_seg_cls_loss.1} parent=31 // pred_fallthru
          _
        %p1551 = scmp.eq.s32.totalorder %s1177, 0
        // Predicated region
        $region61: #{mots_seg_cls_loss.1} parent=31 // pred_check
          %p1552 = pneg %p1551
        $region62: #{mots_seg_cls_loss.1} parent=31 // pred_check_branch
          %1554 = sbr.rel (%p1552) target = $region64
        $region63: #{mots_seg_cls_loss.1} parent=31 // pred_region
          %s1555 = scalar_lea.vmem %s334, 8
          %1556 = vst [vmem:[%s1555] sm:$0xf] 0
          %1557 = vst [vmem:[%s1555 + $0x4] sm:$0xf] 0
        $region64: #{mots_seg_cls_loss.1} parent=31 // pred_fallthru
          _
        // Predicated region
        $region65: #{mots_seg_cls_loss.1} parent=31 // pred_check
          %p1558 = pneg %p337
        $region66: #{mots_seg_cls_loss.1} parent=31 // pred_check_branch
          %1560 = sbr.rel (%p1558) target = $region68
        $region67: #{mots_seg_cls_loss.1} parent=31 // pred_region
          %v1561 = vld [vmem:[#allocation7] sm:$0x1]
          %v1562 = vmax.f32 %v1561, 1.0
          %v1563 = vld [vmem:[#allocation5] sm:$0x1]
          %v1564 = vrcp.pop %v1562
          %v1565 = vmul.f32 %v1563, %v1564
          %v1566 = vld [vmem:[#allocation8] sm:$0x1]
          %v1567 = vld [vmem:[#allocation6] sm:$0x1]
          %v1568 = vmul.f32 %v1567, 200.0
          %v1569 = vadd.f32 %v1566, %v1568
          %v1570 = vrcp.pop 2048.0
          %v1571 = vmul.f32 %v1569, %v1570
          %vm1572 = vcmp.eq.s32.totalorder %v713, 0
          %v1574 = vlaneseq
          %v1575 = vshrl.u32 %v1574, 7
          %v1576 = vsub.s32 0, %v1575
          %v1577 = vrot.slane %v1565, %v1576
          %1578 = vset.pattern.permute.xlu0 0
          %1579 = vperm.xlu0 %1578, %v1577
          %v1580 = vpop.permute.xlu0 %1579
          %v1582 = vsel %vm1572, %v1580, 0.0
          %vm1583 = vcmp.eq.s32.totalorder %v713, 1
          %v1585 = vlaneseq
          %v1586 = vshrl.u32 %v1585, 7
          %v1587 = vsub.s32 0, %v1586
          %v1588 = vrot.slane %v1571, %v1587
          %1589 = vset.pattern.permute.xlu0 0
          %1590 = vperm.xlu0 %1589, %v1588
          %v1591 = vpop.permute.xlu0 %1590
          %v1593 = vsel %vm1583, %v1591, 0.0
          %v1594 = vadd.f32 %v1582, %v1593
          %vm1595 = vcmp.eq.s32.totalorder %v713, 2
          %v1596 = vld [vmem:[#allocation9] sm:$0x1]
          %v1598 = vlaneseq
          %v1599 = vshrl.u32 %v1598, 7
          %v1600 = vsub.s32 0, %v1599
          %v1601 = vrot.slane %v1596, %v1600
          %1602 = vset.pattern.permute.xlu0 0
          %1603 = vperm.xlu0 %1602, %v1601
          %v1604 = vpop.permute.xlu0 %1603
          %v1606 = vsel %vm1595, %v1604, 0.0
          %v1607 = vadd.f32 %v1594, %v1606
          %vm1608 = vcmp.eq.s32.totalorder %v713, 3
          %v1609 = vld [vmem:[#allocation10] sm:$0x1]
          %v1611 = vlaneseq
          %v1612 = vshrl.u32 %v1611, 7
          %v1613 = vsub.s32 0, %v1612
          %v1614 = vrot.slane %v1609, %v1613
          %1615 = vset.pattern.permute.xlu0 0
          %1616 = vperm.xlu0 %1615, %v1614
          %v1617 = vpop.permute.xlu0 %1616
          %v1619 = vsel %vm1608, %v1617, 0.0
          %v1620 = vadd.f32 %v1607, %v1619
          %vm1621 = vcmp.eq.s32.totalorder %v713, 4
          %v1623 = vlaneseq
          %v1624 = vshrl.u32 %v1623, 7
          %v1625 = vsub.s32 0, %v1624
          %v1626 = vrot.slane %v1561, %v1625
          %1627 = vset.pattern.permute.xlu0 0
          %1628 = vperm.xlu0 %1627, %v1626
          %v1629 = vpop.permute.xlu0 %1628
          %v1631 = vsel %vm1621, %v1629, 0.0
          %v1632 = vadd.f32 %v1620, %v1631
          %1633 = vst [vmem:[%s324] sm:$0xff] %v1632
        $region68: #{mots_seg_cls_loss.1} parent=31 // pred_fallthru
          _
        %p1634 = scmp.lt.s32.totalorder %s31, 1
        %s1635 = scalar_select %p1634, %s31, 1
        %s1636 = smul.addr %s1635, 8
        %s1637 = scalar_lea.vmem %s4, %s1636
        %s1638 = smul.u32 2, %s32
        %p1639 = scmp.lt.s32.totalorder %s31, 1
        %s1640 = scalar_select %p1639, %s31, 1
        %p1641 = scmp.lt.s32.totalorder %s1638, 1
        %s1642 = scalar_select %p1641, %s1638, 1
        %s1643 = smul.addr %s1642, 2
        %s1644 = smul.addr %s1640, 4
        %s1645 = sadd.s32 %s1643, %s1644
        %s1646 = smul.addr %s1645, 4
        %s1647 = scalar_lea.vmem %s5, %s1646
        // Predicated region
        $region69: #{mots_seg_cls_loss.1} parent=31 // pred_check
          %p1648 = pneg %p135
        $region70: #{mots_seg_cls_loss.1} parent=31 // pred_check_branch
          %1650 = sbr.rel (%p1648) target = $region72
        $region71: #{mots_seg_cls_loss.1} parent=31 // pred_region
          _
        $region72: #{mots_seg_cls_loss.1} parent=31 // pred_fallthru
          _
        // Predicated region
        $region73: #{mots_seg_cls_loss.1} parent=31 // pred_check
          %p1651 = pneg %p163
        $region74: #{mots_seg_cls_loss.1} parent=31 // pred_check_branch
          %1653 = sbr.rel (%p1651) target = $region76
        $region75: #{mots_seg_cls_loss.1} parent=31 // pred_region
          %s1654 = smul.u32 2, %s32
        $region76: #{mots_seg_cls_loss.1} parent=31 // pred_fallthru
          _
      $region32: #{mots_seg_cls_loss.1} parent=5 // pred_fallthru
        _
      %p1655 = scmp.le.s32.totalorder 2, %s22
      // Predicated region
      $region77: #{mots_seg_cls_loss.1} parent=5 // pred_check
        %p1656 = pneg %p1655
      $region78: #{mots_seg_cls_loss.1} parent=5 // pred_check_branch
        %1658 = sbr.rel (%p1656) target = $region80
      $region79: #{mots_seg_cls_loss.1} parent=5 // pred_region
        %s1659 = ssub.s32 %s22, 2
        // Predicated region
        $region81: #{mots_seg_cls_loss.1} parent=79 // pred_check
          %p1660 = pneg %p141
        $region82: #{mots_seg_cls_loss.1} parent=79 // pred_check_branch
          %1662 = sbr.rel (%p1660) target = $region84
        $region83: #{mots_seg_cls_loss.1} parent=79 // pred_region
          %p1663 = scmp.lt.s32.totalorder %s33, 1
          %s1664 = scalar_select %p1663, %s33, 1
          %s1665 = smul.addr %s1664, 8
          %s1666 = scalar_lea.vmem %s4, %s1665
        $region84: #{mots_seg_cls_loss.1} parent=79 // pred_fallthru
          _
        // Predicated region
        $region85: #{mots_seg_cls_loss.1} parent=79 // pred_check
          %p1667 = pneg %p169
        $region86: #{mots_seg_cls_loss.1} parent=79 // pred_check_branch
          %1669 = sbr.rel (%p1667) target = $region88
        $region87: #{mots_seg_cls_loss.1} parent=79 // pred_region
          %s1670 = smul.u32 2, %s34
          %p1671 = scmp.lt.s32.totalorder %s33, 1
          %s1672 = scalar_select %p1671, %s33, 1
          %p1673 = scmp.lt.s32.totalorder %s1670, 1
          %s1674 = scalar_select %p1673, %s1670, 1
          %s1675 = smul.addr %s1674, 2
          %s1676 = smul.addr %s1672, 4
          %s1677 = sadd.s32 %s1675, %s1676
          %s1678 = smul.addr %s1677, 4
          %s1679 = scalar_lea.vmem %s5, %s1678
        $region88: #{mots_seg_cls_loss.1} parent=79 // pred_fallthru
          _
      $region80: #{mots_seg_cls_loss.1} parent=5 // pred_fallthru
        _
    $region6: #{mots_seg_cls_loss.1} parent=1 // loop_footer
      %s26 = sadd.s32 1, %s22
    $region7: #{mots_seg_cls_loss.1} parent=1 // loop_footer_branch
      %21 = sbr.rel target = $region3
    $region8: #{mots_seg_cls_loss.1} parent=1 // loop_exit
      _
    %1680 = vsyncpa [#allocation14], 1
    %s1681 = scalar_lea.sflag [#allocation14], 1
    %1682 = vsyncpa %s1681, 1
    %1683 = vsyncpa [#allocation16], 1
    %s1684 = scalar_lea.sflag [#allocation16], 1
    %1685 = vsyncpa %s1684, 1

</llo_original>
